<compile_context>
chip_gen: v6e
topology: v6e:2x2x1
jax: 0.10.0
libtpu: 0.0.40
codegen_flags: <defaults>
</compile_context>

<pallas_src>
import math
from functools import lru_cache, partial

import jax
import jax.numpy as jnp
from jax.experimental import pallas as pl
from jax.experimental.pallas import tpu as pltpu


# ---------------------------------------------------------------------------
# Kernel
# ---------------------------------------------------------------------------
def _f_attention_kernel(x_ref, w_in_ref, b_in_ref, w_out_ref, b_out_ref, o_ref,
                        *, bn, G, num_heads, head_dim):
    """One block of `bn` batch elements per grid step.

    x_ref    : (bn, G, E)  f32   real-interleaved tokens
    w_in_ref : (E, 3E)     bf16  in_proj_weight.T, Q columns pre-scaled by 1/sqrt(dh)
    b_in_ref : (1, 3E)     f32   in_proj_bias, Q third pre-scaled
    w_out_ref: (E, E)      bf16  out_proj.weight.T
    b_out_ref: (1, E)      f32
    o_ref    : (bn, G, E)  f32
    """
    E = num_heads * head_dim

    # --- QKV projection: one (bn*G, E) x (E, 3E) bf16 matmul, f32 accumulate ---
    x = x_ref[...].reshape(bn * G, E).astype(jnp.bfloat16)   # leading-dim merge (G % 8 == 0)
    qkv = jnp.dot(x, w_in_ref[...], preferred_element_type=jnp.float32)
    qkv = qkv + b_in_ref[...]                                 # (bn*G, 3E) f32

    # --- attention, per head (nh small & static), batched over bn via einsum ---
    o_heads = []
    for h in range(num_heads):
        lo = h * head_dim
        q = qkv[:, lo:lo + head_dim].reshape(bn, G, head_dim)           # scale already folded in
        k = qkv[:, E + lo:E + lo + head_dim].reshape(bn, G, head_dim)
        v = qkv[:, 2 * E + lo:2 * E + lo + head_dim].reshape(bn, G, head_dim)

        s = jnp.einsum("bqd,bkd->bqk",
                       q.astype(jnp.bfloat16), k.astype(jnp.bfloat16),
                       preferred_element_type=jnp.float32)              # (bn, G, G)
        s = s - jnp.max(s, axis=-1, keepdims=True)
        p = jnp.exp(s)
        p = p * pl.reciprocal(jnp.sum(p, axis=-1, keepdims=True), approx=True)  # EUP slot

        o_h = jnp.einsum("bqk,bkd->bqd",
                         p.astype(jnp.bfloat16), v.astype(jnp.bfloat16),
                         preferred_element_type=jnp.float32)            # (bn, G, dh)
        o_heads.append(o_h.reshape(bn * G, head_dim))

    # --- single K=E output projection on the lane-concatenated head outputs ---
    o_cat = jnp.concatenate(o_heads, axis=-1)                           # (bn*G, E)
    out = jnp.dot(o_cat.astype(jnp.bfloat16), w_out_ref[...],
                  preferred_element_type=jnp.float32)
    out = out + b_out_ref[...]                                          # (bn*G, E)
    o_ref[...] = out.reshape(bn, G, E)


# ---------------------------------------------------------------------------
# Host-side helpers
# ---------------------------------------------------------------------------
@lru_cache(maxsize=None)
def _complex_bitcast_ok():
    """Probe (eagerly, once) whether zero-copy complex<->f32 bitcasts work."""
    try:
        z = jnp.zeros((2,), jnp.complex64)
        r = jax.lax.bitcast_convert_type(z, jnp.float32)
        c = jax.lax.bitcast_convert_type(r, jnp.complex64)
        jax.block_until_ready((r, c))
        return r.shape == (2, 2) and c.shape == (2,)
    except Exception:
        return False


def _complex_to_interleaved(x):
    """complex64 (..., C) -> float32 (..., C, 2) with (re, im) interleaved."""
    if _complex_bitcast_ok():
        return jax.lax.bitcast_convert_type(x, jnp.float32)
    return jnp.stack([jnp.real(x), jnp.imag(x)], axis=-1)


def _interleaved_to_complex(r):
    """float32 (..., 2) -> complex64 (...)."""
    if _complex_bitcast_ok():
        return jax.lax.bitcast_convert_type(r, jnp.complex64)
    return jax.lax.complex(r[..., 0], r[..., 1])


def _pick_block_batch(N, G, E, num_heads, *, vmem_budget_bytes=20 * 1024 * 1024):
    """Largest bn <= ceil(N/2) whose per-step working set fits the budget.

    Targeting N/2 per step keeps exactly 2 'parallel' steps for v7x's two
    TensorCores; on 1-TC chips (v5e/v6e) the extra step costs ~0.35us, which
    is negligible once per-step work is this large.
    """
    if N <= 1:
        return max(N, 1)

    def est_bytes(bn):
        blk = bn * G * E * 4                    # one f32 (bn, G, E) block
        qkv = bn * G * 3 * E * 4                # f32 qkv
        att = bn * num_heads * G * G * 6        # f32 scores + bf16 probs
        return 4 * blk + qkv + att              # in+out blocks, double-buffered

    target = (N + 1) // 2
    bn = 1
    for cand in range(1, target + 1):
        if est_bytes(cand) <= vmem_budget_bytes:
            bn = cand
    return bn


def f_attention_pallas(x_complex, params, *, H, W, hidden_dim, num_heads,
                       block_batch=None):
    """JAX equivalent of the spectral MHA forward (eval mode)."""
    F = W // 2 + 1
    G = H * F
    E = hidden_dim * 2
    head_dim = E // num_heads
    assert num_heads * head_dim == E
    N = x_complex.shape[0]

    # complex -> real-interleaved (zero-copy bitcast when supported)
    xr = _complex_to_interleaved(x_complex)                 # (N, H, F, hd, 2) f32
    xr = xr.reshape(N, G, E).astype(jnp.float32)

    bn = block_batch if block_batch is not None else _pick_block_batch(N, G, E, num_heads)
    n_pad = (-N) % bn
    if n_pad:
        xr = jnp.pad(xr, ((0, n_pad), (0, 0), (0, 0)))
    N_pad = N + n_pad

    # One-time host prep of grid-invariant weights: transpose, fold the
    # 1/sqrt(head_dim) scale into the Q part, cast matmul operands to bf16.
    scale = 1.0 / math.sqrt(head_dim)
    scale_vec = jnp.concatenate([jnp.full((E,), scale, jnp.float32),
                                 jnp.ones((2 * E,), jnp.float32)])
    w_in = jnp.asarray(params["in_proj_weight"], jnp.float32)          # (3E, E)
    w_in_t = (w_in * scale_vec[:, None]).T.astype(jnp.bfloat16)        # (E, 3E)
    b_in = (jnp.asarray(params["in_proj_bias"], jnp.float32) * scale_vec).reshape(1, 3 * E)
    w_out_t = jnp.asarray(params["out_proj_weight"], jnp.float32).T.astype(jnp.bfloat16)  # (E, E)
    b_out = jnp.asarray(params["out_proj_bias"], jnp.float32).reshape(1, E)

    kernel = partial(_f_attention_kernel, bn=bn, G=G,
                     num_heads=num_heads, head_dim=head_dim)

    out = pl.pallas_call(
        kernel,
        out_shape=jax.ShapeDtypeStruct((N_pad, G, E), jnp.float32),
        grid_spec=pltpu.PrefetchScalarGridSpec(
            num_scalar_prefetch=0,
            grid=(N_pad // bn,),
            in_specs=[
                pl.BlockSpec((bn, G, E), lambda n: (n, 0, 0)),
                pl.BlockSpec((E, 3 * E), lambda n: (0, 0)),
                pl.BlockSpec((1, 3 * E), lambda n: (0, 0)),
                pl.BlockSpec((E, E), lambda n: (0, 0)),
                pl.BlockSpec((1, E), lambda n: (0, 0)),
            ],
            out_specs=pl.BlockSpec((bn, G, E), lambda n: (n, 0, 0)),
        ),
        compiler_params=pltpu.CompilerParams(
            dimension_semantics=("parallel",),
            vmem_limit_bytes=40 * 1024 * 1024),
    )(xr, w_in_t, b_in, w_out_t, b_out)

    # strip batch padding, reshape back to complex (zero-copy bitcast)
    out = out[:N].reshape(N, H, F, hidden_dim, 2)
    return _interleaved_to_complex(out)


# ---------------------------------------------------------------------------
# Pure-jnp f32 reference (mirrors nn.MultiheadAttention, eval mode)
# ---------------------------------------------------------------------------
def f_attention_reference(x_complex, params, *, H, W, hidden_dim, num_heads):
    F = W // 2 + 1
    G = H * F
    E = hidden_dim * 2
    head_dim = E // num_heads
    N = x_complex.shape[0]

    xr = jnp.stack([jnp.real(x_complex), jnp.imag(x_complex)], axis=-1)
    xr = xr.reshape(N, G, E).astype(jnp.float32)

    qkv = jnp.einsum("ngd,ed->nge", xr, params["in_proj_weight"]) + params["in_proj_bias"]
    q, k, v = jnp.split(qkv, 3, axis=-1)

    def heads(t):  # (N,G,E) -> (N,h,G,dh)
        return t.reshape(N, G, num_heads, head_dim).transpose(0, 2, 1, 3)

    qh, kh, vh = heads(q), heads(k), heads(v)
    s = jnp.einsum("nhqd,nhkd->nhqk", qh, kh) / math.sqrt(head_dim)
    p = jax.nn.softmax(s, axis=-1)
    o = jnp.einsum("nhqk,nhkd->nhqd", p, vh)
    o = o.transpose(0, 2, 1, 3).reshape(N, G, E)
    o = jnp.einsum("nge,de->ngd", o, params["out_proj_weight"]) + params["out_proj_bias"]
    o = o.reshape(N, H, F, hidden_dim, 2)
    return jax.lax.complex(o[..., 0], o[..., 1])


def init_params(key, hidden_dim, *, num_heads):
    """Parameter init matching nn.MultiheadAttention shapes (small random biases
    so the bias path is exercised; PyTorch's default would be zeros)."""
    E = hidden_dim * 2
    k1, k2, k3, k4 = jax.random.split(key, 4)
    lim_in = math.sqrt(6.0 / (3 * E + E))
    in_proj_weight = jax.random.uniform(k1, (3 * E, E), jnp.float32, -lim_in, lim_in)
    in_proj_bias = 0.02 * jax.random.normal(k3, (3 * E,), jnp.float32)
    lim_out = math.sqrt(1.0 / E)
    out_proj_weight = jax.random.uniform(k2, (E, E), jnp.float32, -lim_out, lim_out)
    out_proj_bias = 0.02 * jax.random.normal(k4, (E,), jnp.float32)
    return {
        "in_proj_weight": in_proj_weight,
        "in_proj_bias": in_proj_bias,
        "out_proj_weight": out_proj_weight,
        "out_proj_bias": out_proj_bias,
    }


if __name__ == "__main__":
    # Small shapes consistent with the module:
    N, H, W, hidden_dim, num_heads = 4, 8, 8, 16, 4
    F = W // 2 + 1          # 5
    G = H * F               # 40
    E = hidden_dim * 2      # 32 (embed dim of the MHA), head_dim = 8

    key = jax.random.PRNGKey(0)
    kx_re, kx_im, kp = jax.random.split(key, 3)
    x_re = jax.random.normal(kx_re, (N, H, F, hidden_dim), jnp.float32)
    x_im = jax.random.normal(kx_im, (N, H, F, hidden_dim), jnp.float32)
    x = jax.lax.complex(x_re, x_im)     # (N, H, F, hidden_dim) complex64

    params = init_params(kp, hidden_dim, num_heads=num_heads)

    out = jax.block_until_ready(
        f_attention_pallas(x, params, H=H, W=W,
                           hidden_dim=hidden_dim, num_heads=num_heads))
    ref = jax.block_until_ready(
        f_attention_reference(x, params, H=H, W=W,
                              hidden_dim=hidden_dim, num_heads=num_heads))

    assert out.shape == (N, H, F, hidden_dim)
    assert out.dtype == jnp.complex64
    # Kernel uses bf16 MXU inputs with f32 accumulation and an EUP approx
    # reciprocal in the softmax; compare with a relative-norm check.
    rel_err = float(jnp.linalg.norm(out - ref) / jnp.linalg.norm(ref))
    assert rel_err < 1e-2, f"relative error vs reference too large: {rel_err}"

    print("KERNEL_OK")
</pallas_src>

<mosaic_0001>
module attributes {stable_mosaic.version = 11 : i64} {
  func.func @_f_attention_kernel(%arg0: i32, %arg1: memref<2x40x32xf32, #tpu.memory_space<vmem>>, %arg2: memref<32x96xbf16, #tpu.memory_space<vmem>>, %arg3: memref<1x96xf32, #tpu.memory_space<vmem>>, %arg4: memref<32x32xbf16, #tpu.memory_space<vmem>>, %arg5: memref<1x32xf32, #tpu.memory_space<vmem>>, %arg6: memref<2x40x32xf32, #tpu.memory_space<vmem>>) attributes {dimension_semantics = [#tpu.dimension_semantics<parallel>], iteration_bounds = array<i64: 2>, scalar_prefetch = 0 : i64, scratch_operands = 0 : i64, tpu.core_type = #tpu.core_type<tc>, window_params = [{transform_indices = @transform_0, window_bounds = array<i64: 2, 40, 32>}, {pipeline_mode = #tpu.pipeline_mode<synchronous>, transform_indices = @transform_1, window_bounds = array<i64: 32, 96>}, {pipeline_mode = #tpu.pipeline_mode<synchronous>, transform_indices = @transform_2, window_bounds = array<i64: 1, 96>}, {pipeline_mode = #tpu.pipeline_mode<synchronous>, transform_indices = @transform_3, window_bounds = array<i64: 32, 32>}, {pipeline_mode = #tpu.pipeline_mode<synchronous>, transform_indices = @transform_4, window_bounds = array<i64: 1, 32>}, {transform_indices = @transform_5, window_bounds = array<i64: 2, 40, 32>}]} {
    %c0 = arith.constant 0 : index
    %c0_0 = arith.constant 0 : index
    %c0_1 = arith.constant 0 : index
    %0 = vector.load %arg1[%c0, %c0_0, %c0_1] : memref<2x40x32xf32, #tpu.memory_space<vmem>>, vector<2x40x32xf32>
    %1 = vector.shape_cast %0 : vector<2x40x32xf32> to vector<80x32xf32>
    %2 = arith.truncf %1 : vector<80x32xf32> to vector<80x32xbf16>
    %c0_2 = arith.constant 0 : index
    %c0_3 = arith.constant 0 : index
    %3 = vector.load %arg2[%c0_2, %c0_3] : memref<32x96xbf16, #tpu.memory_space<vmem>>, vector<32x96xbf16>
    %cst = arith.constant dense<0.000000e+00> : vector<80x96xf32>
    %4 = tpu.matmul %2, %3, %cst {dimension_numbers = #tpu.dot_dimension_numbers<[1], [0], [0], [1], [0, 0, 1, 1], [], []>} : vector<80x32xbf16>, vector<32x96xbf16>, vector<80x96xf32> -> vector<80x96xf32>
    %c0_4 = arith.constant 0 : index
    %c0_5 = arith.constant 0 : index
    %5 = vector.load %arg3[%c0_4, %c0_5] : memref<1x96xf32, #tpu.memory_space<vmem>>, vector<1x96xf32>
    %6 = vector.broadcast %5 : vector<1x96xf32> to vector<80x96xf32>
    %7 = arith.addf %4, %6 : vector<80x96xf32>
    %8 = vector.extract_strided_slice %7 {offsets = [0, 0], sizes = [80, 8], strides = [1, 1]} : vector<80x96xf32> to vector<80x8xf32>
    %9 = vector.shape_cast %8 : vector<80x8xf32> to vector<2x40x8xf32>
    %10 = vector.extract_strided_slice %7 {offsets = [0, 32], sizes = [80, 8], strides = [1, 1]} : vector<80x96xf32> to vector<80x8xf32>
    %11 = vector.shape_cast %10 : vector<80x8xf32> to vector<2x40x8xf32>
    %12 = vector.extract_strided_slice %7 {offsets = [0, 64], sizes = [80, 8], strides = [1, 1]} : vector<80x96xf32> to vector<80x8xf32>
    %13 = vector.shape_cast %12 : vector<80x8xf32> to vector<2x40x8xf32>
    %14 = arith.truncf %9 : vector<2x40x8xf32> to vector<2x40x8xbf16>
    %15 = arith.truncf %11 : vector<2x40x8xf32> to vector<2x40x8xbf16>
    "tpu.trace_start"() <{level = 10 : i32, message = "bqd,bkd->bqk"}> : () -> ()
    %cst_6 = arith.constant dense<0.000000e+00> : vector<2x40x40xf32>
    %16 = tpu.matmul %14, %15, %cst_6 {dimension_numbers = #tpu.dot_dimension_numbers<[2], [2], [1], [1], [0, 0, 0, 1, 1, 1], [0], [0]>} : vector<2x40x8xbf16>, vector<2x40x8xbf16>, vector<2x40x40xf32> -> vector<2x40x40xf32>
    "tpu.trace_stop"() : () -> ()
    %cst_7 = arith.constant dense<0xFF800000> : vector<2x40xf32>
    %17 = vector.multi_reduction <maximumf>, %16, %cst_7 [2] : vector<2x40x40xf32> to vector<2x40xf32>
    %18 = vector.shape_cast %17 : vector<2x40xf32> to vector<2x40x1xf32>
    %19 = vector.broadcast %18 : vector<2x40x1xf32> to vector<2x40x40xf32>
    %20 = arith.subf %16, %19 : vector<2x40x40xf32>
    %21 = math.exp %20 : vector<2x40x40xf32>
    %cst_8 = arith.constant dense<0.000000e+00> : vector<2x40xf32>
    %22 = vector.multi_reduction <add>, %21, %cst_8 [2] : vector<2x40x40xf32> to vector<2x40xf32>
    %23 = vector.shape_cast %22 : vector<2x40xf32> to vector<2x40x1xf32>
    %24 = tpu.reciprocal %23 {approx = true} : vector<2x40x1xf32> -> vector<2x40x1xf32>
    %25 = vector.broadcast %24 : vector<2x40x1xf32> to vector<2x40x40xf32>
    %26 = arith.mulf %21, %25 : vector<2x40x40xf32>
    %27 = arith.truncf %26 : vector<2x40x40xf32> to vector<2x40x40xbf16>
    %28 = arith.truncf %13 : vector<2x40x8xf32> to vector<2x40x8xbf16>
    "tpu.trace_start"() <{level = 10 : i32, message = "bqk,bkd->bqd"}> : () -> ()
    %cst_9 = arith.constant dense<0.000000e+00> : vector<2x40x8xf32>
    %29 = tpu.matmul %27, %28, %cst_9 {dimension_numbers = #tpu.dot_dimension_numbers<[2], [1], [1], [2], [0, 0, 0, 1, 1, 2], [0], [0]>} : vector<2x40x40xbf16>, vector<2x40x8xbf16>, vector<2x40x8xf32> -> vector<2x40x8xf32>
    "tpu.trace_stop"() : () -> ()
    %30 = vector.shape_cast %29 : vector<2x40x8xf32> to vector<80x8xf32>
    %31 = vector.extract_strided_slice %7 {offsets = [0, 8], sizes = [80, 8], strides = [1, 1]} : vector<80x96xf32> to vector<80x8xf32>
    %32 = vector.shape_cast %31 : vector<80x8xf32> to vector<2x40x8xf32>
    %33 = vector.extract_strided_slice %7 {offsets = [0, 40], sizes = [80, 8], strides = [1, 1]} : vector<80x96xf32> to vector<80x8xf32>
    %34 = vector.shape_cast %33 : vector<80x8xf32> to vector<2x40x8xf32>
    %35 = vector.extract_strided_slice %7 {offsets = [0, 72], sizes = [80, 8], strides = [1, 1]} : vector<80x96xf32> to vector<80x8xf32>
    %36 = vector.shape_cast %35 : vector<80x8xf32> to vector<2x40x8xf32>
    %37 = arith.truncf %32 : vector<2x40x8xf32> to vector<2x40x8xbf16>
    %38 = arith.truncf %34 : vector<2x40x8xf32> to vector<2x40x8xbf16>
    "tpu.trace_start"() <{level = 10 : i32, message = "bqd,bkd->bqk"}> : () -> ()
    %cst_10 = arith.constant dense<0.000000e+00> : vector<2x40x40xf32>
    %39 = tpu.matmul %37, %38, %cst_10 {dimension_numbers = #tpu.dot_dimension_numbers<[2], [2], [1], [1], [0, 0, 0, 1, 1, 1], [0], [0]>} : vector<2x40x8xbf16>, vector<2x40x8xbf16>, vector<2x40x40xf32> -> vector<2x40x40xf32>
    "tpu.trace_stop"() : () -> ()
    %cst_11 = arith.constant dense<0xFF800000> : vector<2x40xf32>
    %40 = vector.multi_reduction <maximumf>, %39, %cst_11 [2] : vector<2x40x40xf32> to vector<2x40xf32>
    %41 = vector.shape_cast %40 : vector<2x40xf32> to vector<2x40x1xf32>
    %42 = vector.broadcast %41 : vector<2x40x1xf32> to vector<2x40x40xf32>
    %43 = arith.subf %39, %42 : vector<2x40x40xf32>
    %44 = math.exp %43 : vector<2x40x40xf32>
    %cst_12 = arith.constant dense<0.000000e+00> : vector<2x40xf32>
    %45 = vector.multi_reduction <add>, %44, %cst_12 [2] : vector<2x40x40xf32> to vector<2x40xf32>
    %46 = vector.shape_cast %45 : vector<2x40xf32> to vector<2x40x1xf32>
    %47 = tpu.reciprocal %46 {approx = true} : vector<2x40x1xf32> -> vector<2x40x1xf32>
    %48 = vector.broadcast %47 : vector<2x40x1xf32> to vector<2x40x40xf32>
    %49 = arith.mulf %44, %48 : vector<2x40x40xf32>
    %50 = arith.truncf %49 : vector<2x40x40xf32> to vector<2x40x40xbf16>
    %51 = arith.truncf %36 : vector<2x40x8xf32> to vector<2x40x8xbf16>
    "tpu.trace_start"() <{level = 10 : i32, message = "bqk,bkd->bqd"}> : () -> ()
    %cst_13 = arith.constant dense<0.000000e+00> : vector<2x40x8xf32>
    %52 = tpu.matmul %50, %51, %cst_13 {dimension_numbers = #tpu.dot_dimension_numbers<[2], [1], [1], [2], [0, 0, 0, 1, 1, 2], [0], [0]>} : vector<2x40x40xbf16>, vector<2x40x8xbf16>, vector<2x40x8xf32> -> vector<2x40x8xf32>
    "tpu.trace_stop"() : () -> ()
    %53 = vector.shape_cast %52 : vector<2x40x8xf32> to vector<80x8xf32>
    %54 = vector.extract_strided_slice %7 {offsets = [0, 16], sizes = [80, 8], strides = [1, 1]} : vector<80x96xf32> to vector<80x8xf32>
    %55 = vector.shape_cast %54 : vector<80x8xf32> to vector<2x40x8xf32>
    %56 = vector.extract_strided_slice %7 {offsets = [0, 48], sizes = [80, 8], strides = [1, 1]} : vector<80x96xf32> to vector<80x8xf32>
    %57 = vector.shape_cast %56 : vector<80x8xf32> to vector<2x40x8xf32>
    %58 = vector.extract_strided_slice %7 {offsets = [0, 80], sizes = [80, 8], strides = [1, 1]} : vector<80x96xf32> to vector<80x8xf32>
    %59 = vector.shape_cast %58 : vector<80x8xf32> to vector<2x40x8xf32>
    %60 = arith.truncf %55 : vector<2x40x8xf32> to vector<2x40x8xbf16>
    %61 = arith.truncf %57 : vector<2x40x8xf32> to vector<2x40x8xbf16>
    "tpu.trace_start"() <{level = 10 : i32, message = "bqd,bkd->bqk"}> : () -> ()
    %cst_14 = arith.constant dense<0.000000e+00> : vector<2x40x40xf32>
    %62 = tpu.matmul %60, %61, %cst_14 {dimension_numbers = #tpu.dot_dimension_numbers<[2], [2], [1], [1], [0, 0, 0, 1, 1, 1], [0], [0]>} : vector<2x40x8xbf16>, vector<2x40x8xbf16>, vector<2x40x40xf32> -> vector<2x40x40xf32>
    "tpu.trace_stop"() : () -> ()
    %cst_15 = arith.constant dense<0xFF800000> : vector<2x40xf32>
    %63 = vector.multi_reduction <maximumf>, %62, %cst_15 [2] : vector<2x40x40xf32> to vector<2x40xf32>
    %64 = vector.shape_cast %63 : vector<2x40xf32> to vector<2x40x1xf32>
    %65 = vector.broadcast %64 : vector<2x40x1xf32> to vector<2x40x40xf32>
    %66 = arith.subf %62, %65 : vector<2x40x40xf32>
    %67 = math.exp %66 : vector<2x40x40xf32>
    %cst_16 = arith.constant dense<0.000000e+00> : vector<2x40xf32>
    %68 = vector.multi_reduction <add>, %67, %cst_16 [2] : vector<2x40x40xf32> to vector<2x40xf32>
    %69 = vector.shape_cast %68 : vector<2x40xf32> to vector<2x40x1xf32>
    %70 = tpu.reciprocal %69 {approx = true} : vector<2x40x1xf32> -> vector<2x40x1xf32>
    %71 = vector.broadcast %70 : vector<2x40x1xf32> to vector<2x40x40xf32>
    %72 = arith.mulf %67, %71 : vector<2x40x40xf32>
    %73 = arith.truncf %72 : vector<2x40x40xf32> to vector<2x40x40xbf16>
    %74 = arith.truncf %59 : vector<2x40x8xf32> to vector<2x40x8xbf16>
    "tpu.trace_start"() <{level = 10 : i32, message = "bqk,bkd->bqd"}> : () -> ()
    %cst_17 = arith.constant dense<0.000000e+00> : vector<2x40x8xf32>
    %75 = tpu.matmul %73, %74, %cst_17 {dimension_numbers = #tpu.dot_dimension_numbers<[2], [1], [1], [2], [0, 0, 0, 1, 1, 2], [0], [0]>} : vector<2x40x40xbf16>, vector<2x40x8xbf16>, vector<2x40x8xf32> -> vector<2x40x8xf32>
    "tpu.trace_stop"() : () -> ()
    %76 = vector.shape_cast %75 : vector<2x40x8xf32> to vector<80x8xf32>
    %77 = vector.extract_strided_slice %7 {offsets = [0, 24], sizes = [80, 8], strides = [1, 1]} : vector<80x96xf32> to vector<80x8xf32>
    %78 = vector.shape_cast %77 : vector<80x8xf32> to vector<2x40x8xf32>
    %79 = vector.extract_strided_slice %7 {offsets = [0, 56], sizes = [80, 8], strides = [1, 1]} : vector<80x96xf32> to vector<80x8xf32>
    %80 = vector.shape_cast %79 : vector<80x8xf32> to vector<2x40x8xf32>
    %81 = vector.extract_strided_slice %7 {offsets = [0, 88], sizes = [80, 8], strides = [1, 1]} : vector<80x96xf32> to vector<80x8xf32>
    %82 = vector.shape_cast %81 : vector<80x8xf32> to vector<2x40x8xf32>
    %83 = arith.truncf %78 : vector<2x40x8xf32> to vector<2x40x8xbf16>
    %84 = arith.truncf %80 : vector<2x40x8xf32> to vector<2x40x8xbf16>
    "tpu.trace_start"() <{level = 10 : i32, message = "bqd,bkd->bqk"}> : () -> ()
    %cst_18 = arith.constant dense<0.000000e+00> : vector<2x40x40xf32>
    %85 = tpu.matmul %83, %84, %cst_18 {dimension_numbers = #tpu.dot_dimension_numbers<[2], [2], [1], [1], [0, 0, 0, 1, 1, 1], [0], [0]>} : vector<2x40x8xbf16>, vector<2x40x8xbf16>, vector<2x40x40xf32> -> vector<2x40x40xf32>
    "tpu.trace_stop"() : () -> ()
    %cst_19 = arith.constant dense<0xFF800000> : vector<2x40xf32>
    %86 = vector.multi_reduction <maximumf>, %85, %cst_19 [2] : vector<2x40x40xf32> to vector<2x40xf32>
    %87 = vector.shape_cast %86 : vector<2x40xf32> to vector<2x40x1xf32>
    %88 = vector.broadcast %87 : vector<2x40x1xf32> to vector<2x40x40xf32>
    %89 = arith.subf %85, %88 : vector<2x40x40xf32>
    %90 = math.exp %89 : vector<2x40x40xf32>
    %cst_20 = arith.constant dense<0.000000e+00> : vector<2x40xf32>
    %91 = vector.multi_reduction <add>, %90, %cst_20 [2] : vector<2x40x40xf32> to vector<2x40xf32>
    %92 = vector.shape_cast %91 : vector<2x40xf32> to vector<2x40x1xf32>
    %93 = tpu.reciprocal %92 {approx = true} : vector<2x40x1xf32> -> vector<2x40x1xf32>
    %94 = vector.broadcast %93 : vector<2x40x1xf32> to vector<2x40x40xf32>
    %95 = arith.mulf %90, %94 : vector<2x40x40xf32>
    %96 = arith.truncf %95 : vector<2x40x40xf32> to vector<2x40x40xbf16>
    %97 = arith.truncf %82 : vector<2x40x8xf32> to vector<2x40x8xbf16>
    "tpu.trace_start"() <{level = 10 : i32, message = "bqk,bkd->bqd"}> : () -> ()
    %cst_21 = arith.constant dense<0.000000e+00> : vector<2x40x8xf32>
    %98 = tpu.matmul %96, %97, %cst_21 {dimension_numbers = #tpu.dot_dimension_numbers<[2], [1], [1], [2], [0, 0, 0, 1, 1, 2], [0], [0]>} : vector<2x40x40xbf16>, vector<2x40x8xbf16>, vector<2x40x8xf32> -> vector<2x40x8xf32>
    "tpu.trace_stop"() : () -> ()
    %99 = vector.shape_cast %98 : vector<2x40x8xf32> to vector<80x8xf32>
    %100 = tpu.concatenate %30, %53, %76, %99 in 1 : vector<80x8xf32>, vector<80x8xf32>, vector<80x8xf32>, vector<80x8xf32> -> vector<80x32xf32>
    %101 = arith.truncf %100 : vector<80x32xf32> to vector<80x32xbf16>
    %c0_22 = arith.constant 0 : index
    %c0_23 = arith.constant 0 : index
    %102 = vector.load %arg4[%c0_22, %c0_23] : memref<32x32xbf16, #tpu.memory_space<vmem>>, vector<32x32xbf16>
    %cst_24 = arith.constant dense<0.000000e+00> : vector<80x32xf32>
    %103 = tpu.matmul %101, %102, %cst_24 {dimension_numbers = #tpu.dot_dimension_numbers<[1], [0], [0], [1], [0, 0, 1, 1], [], []>} : vector<80x32xbf16>, vector<32x32xbf16>, vector<80x32xf32> -> vector<80x32xf32>
    %c0_25 = arith.constant 0 : index
    %c0_26 = arith.constant 0 : index
    %104 = vector.load %arg5[%c0_25, %c0_26] : memref<1x32xf32, #tpu.memory_space<vmem>>, vector<1x32xf32>
    %105 = vector.broadcast %104 : vector<1x32xf32> to vector<80x32xf32>
    %106 = arith.addf %103, %105 : vector<80x32xf32>
    %107 = vector.shape_cast %106 : vector<80x32xf32> to vector<2x40x32xf32>
    %c0_27 = arith.constant 0 : index
    %c0_28 = arith.constant 0 : index
    %c0_29 = arith.constant 0 : index
    %108 = vector.load %arg6[%c0_27, %c0_28, %c0_29] : memref<2x40x32xf32, #tpu.memory_space<vmem>>, vector<2x40x32xf32>
    tpu.vector_store %arg6[%c0_27, %c0_28, %c0_29], %107 {strides = array<i32>} : memref<2x40x32xf32, #tpu.memory_space<vmem>>, vector<2x40x32xf32>,
    return
  }
  func.func @transform_0(%arg0: i32) -> (i32, i32, i32) {
    %c0_i32 = arith.constant 0 : i32
    %c0_i32_0 = arith.constant 0 : i32
    %c0_i32_1 = arith.constant 0 : i32
    return %arg0, %c0_i32, %c0_i32_0 : i32, i32, i32
  }
  func.func @transform_1(%arg0: i32) -> (i32, i32) {
    %c0_i32 = arith.constant 0 : i32
    %c0_i32_0 = arith.constant 0 : i32
    %c0_i32_1 = arith.constant 0 : i32
    return %c0_i32, %c0_i32_0 : i32, i32
  }
  func.func @transform_2(%arg0: i32) -> (i32, i32) {
    %c0_i32 = arith.constant 0 : i32
    %c0_i32_0 = arith.constant 0 : i32
    %c0_i32_1 = arith.constant 0 : i32
    return %c0_i32, %c0_i32_0 : i32, i32
  }
  func.func @transform_3(%arg0: i32) -> (i32, i32) {
    %c0_i32 = arith.constant 0 : i32
    %c0_i32_0 = arith.constant 0 : i32
    %c0_i32_1 = arith.constant 0 : i32
    return %c0_i32, %c0_i32_0 : i32, i32
  }
  func.func @transform_4(%arg0: i32) -> (i32, i32) {
    %c0_i32 = arith.constant 0 : i32
    %c0_i32_0 = arith.constant 0 : i32
    %c0_i32_1 = arith.constant 0 : i32
    return %c0_i32, %c0_i32_0 : i32, i32
  }
  func.func @transform_5(%arg0: i32) -> (i32, i32, i32) {
    %c0_i32 = arith.constant 0 : i32
    %c0_i32_0 = arith.constant 0 : i32
    %c0_i32_1 = arith.constant 0 : i32
    return %arg0, %c0_i32, %c0_i32_0 : i32, i32, i32
  }
}

</mosaic_0001>

<llo_original>
// kernel: tpu_custom_call.1
$region0: #{tpu_custom_call.1}
  #allocation0 [shape = 'u32[]', space=smem, size = 0x4, offset = 0x4, fixed_abs, tag = 'smem constant byte address 0x4 - core index']
  #allocation1 [shape = 'u32[144,128]{1,0:T(1,128)}', space=vmem, size = 0x12000, scoped, tag = 'internal scratch']
  %s0 = inlined_call_operand.vmem [shape: f32[4,40,32], index: 0, kind: input, shape index: {}]
  %s1 = inlined_call_operand.vmem [shape: bf16[32,96], index: 1, kind: input, shape index: {}]
  %s2 = inlined_call_operand.vmem [shape: f32[1,96], index: 2, kind: input, shape index: {}]
  %s3 = inlined_call_operand.vmem [shape: bf16[32,32], index: 3, kind: input, shape index: {}]
  %s4 = inlined_call_operand.vmem [shape: f32[1,32], index: 4, kind: input, shape index: {}]
  %s5 = inlined_call_operand.vmem [shape: f32[4,40,32], index: 5, kind: output, shape index: {}]
  %s6 = sld [smem:[#allocation0]]
  $region53: #{tpu_custom_call.1} parent=0
    _
  %s8 = ssub.s32 1, %s6
  %s9 = scalar_select 0, %s8, %s6
  loop: start=0, step=1, limit=4
  $region2: #{tpu_custom_call.1} parent=0 // loop_pre_header
    _
  $region3: #{tpu_custom_call.1} parent=0 // loop_header
    %s11 = sphi 0, %s15
    %p12 = scmp.ge.s32.totalorder %s11, 4
    %s21 = sphi 0, %s23
    %s24 = sphi 0, %s21
    %s25 = sphi 0, %s24
    %s41 = sphi 0, %s25
    %s45 = sphi 0, %s45
    %s47 = sphi 0, %s45
    %s48 = sphi 0, %s47
    %s62 = sphi 0, %s48
    %s66 = sphi 0, %s66
    %s68 = sphi 0, %s66
    %s69 = sphi 0, %s68
    %s83 = sphi 0, %s69
    %s87 = sphi 0, %s87
    %s89 = sphi 0, %s87
    %s90 = sphi 0, %s89
    %s104 = sphi 0, %s90
    %s108 = sphi 0, %s108
    %s110 = sphi 0, %s108
    %s111 = sphi 0, %s110
    %s125 = sphi 0, %s111
    %s131 = sphi 0, %s133
    %s134 = sphi 0, %s131
    %s135 = sphi 0, %s134
    %s151 = sphi 0, %s135
  $region4: #{tpu_custom_call.1} parent=0 // loop_header_branch
    %14 = sbr.rel (%p12) target = $region8
  $region5: #{tpu_custom_call.1} parent=0 // loop_body
    %s16 = ssub.s32 %s11, 1
    %s17 = ssub.s32 %s11, 2
    %s18 = sadd.s32 %s11, 1
    %s19 = ssub.s32 %s11, %s18
    %p20 = scmp.eq.s32.totalorder %s19, 0
    %s22 = sadd.s32 %s21, 1
    %s23 = scalar_select %p20, %s21, %s22
    %p26 = pneg %p20
    %p27 = scmp.eq.s32.totalorder %s11, 1
    %p28 = por %p26, %p27
    %p29 = scmp.ne.s32.totalorder %s21, %s24
    %p30 = scmp.eq.s32.totalorder %s11, 0
    %p31 = por %p29, %p30
    %p32 = scmp.ne.s32.totalorder %s21, %s24
    %p33 = scmp.eq.s32.totalorder %s16, 1
    %p34 = por %p32, %p33
    %p35 = scmp.ne.s32.totalorder %s24, %s25
    %p36 = scmp.eq.s32.totalorder %s16, 0
    %p37 = por %p35, %p36
    %p38 = scmp.ne.s32.totalorder %s24, %s25
    %p39 = scmp.eq.s32.totalorder %s17, 1
    %p40 = por %p38, %p39
    %p42 = scmp.ne.s32.totalorder %s25, %s41
    %p43 = scmp.eq.s32.totalorder %s17, 0
    %p44 = por %p42, %p43
    %s46 = sadd.s32 %s45, 1
    %p49 = scmp.eq.s32.totalorder %s11, 1
    %p50 = scmp.ne.s32.totalorder %s45, %s47
    %p51 = scmp.eq.s32.totalorder %s11, 0
    %p52 = por %p50, %p51
    %p53 = scmp.ne.s32.totalorder %s45, %s47
    %p54 = scmp.eq.s32.totalorder %s16, 1
    %p55 = por %p53, %p54
    %p56 = scmp.ne.s32.totalorder %s47, %s48
    %p57 = scmp.eq.s32.totalorder %s16, 0
    %p58 = por %p56, %p57
    %p59 = scmp.ne.s32.totalorder %s47, %s48
    %p60 = scmp.eq.s32.totalorder %s17, 1
    %p61 = por %p59, %p60
    %p63 = scmp.ne.s32.totalorder %s48, %s62
    %p64 = scmp.eq.s32.totalorder %s17, 0
    %p65 = por %p63, %p64
    %s67 = sadd.s32 %s66, 1
    %p70 = scmp.eq.s32.totalorder %s11, 1
    %p71 = scmp.ne.s32.totalorder %s66, %s68
    %p72 = scmp.eq.s32.totalorder %s11, 0
    %p73 = por %p71, %p72
    %p74 = scmp.ne.s32.totalorder %s66, %s68
    %p75 = scmp.eq.s32.totalorder %s16, 1
    %p76 = por %p74, %p75
    %p77 = scmp.ne.s32.totalorder %s68, %s69
    %p78 = scmp.eq.s32.totalorder %s16, 0
    %p79 = por %p77, %p78
    %p80 = scmp.ne.s32.totalorder %s68, %s69
    %p81 = scmp.eq.s32.totalorder %s17, 1
    %p82 = por %p80, %p81
    %p84 = scmp.ne.s32.totalorder %s69, %s83
    %p85 = scmp.eq.s32.totalorder %s17, 0
    %p86 = por %p84, %p85
    %s88 = sadd.s32 %s87, 1
    %p91 = scmp.eq.s32.totalorder %s11, 1
    %p92 = scmp.ne.s32.totalorder %s87, %s89
    %p93 = scmp.eq.s32.totalorder %s11, 0
    %p94 = por %p92, %p93
    %p95 = scmp.ne.s32.totalorder %s87, %s89
    %p96 = scmp.eq.s32.totalorder %s16, 1
    %p97 = por %p95, %p96
    %p98 = scmp.ne.s32.totalorder %s89, %s90
    %p99 = scmp.eq.s32.totalorder %s16, 0
    %p100 = por %p98, %p99
    %p101 = scmp.ne.s32.totalorder %s89, %s90
    %p102 = scmp.eq.s32.totalorder %s17, 1
    %p103 = por %p101, %p102
    %p105 = scmp.ne.s32.totalorder %s90, %s104
    %p106 = scmp.eq.s32.totalorder %s17, 0
    %p107 = por %p105, %p106
    %s109 = sadd.s32 %s108, 1
    %p112 = scmp.eq.s32.totalorder %s11, 1
    %p113 = scmp.ne.s32.totalorder %s108, %s110
    %p114 = scmp.eq.s32.totalorder %s11, 0
    %p115 = por %p113, %p114
    %p116 = scmp.ne.s32.totalorder %s108, %s110
    %p117 = scmp.eq.s32.totalorder %s16, 1
    %p118 = por %p116, %p117
    %p119 = scmp.ne.s32.totalorder %s110, %s111
    %p120 = scmp.eq.s32.totalorder %s16, 0
    %p121 = por %p119, %p120
    %p122 = scmp.ne.s32.totalorder %s110, %s111
    %p123 = scmp.eq.s32.totalorder %s17, 1
    %p124 = por %p122, %p123
    %p126 = scmp.ne.s32.totalorder %s111, %s125
    %p127 = scmp.eq.s32.totalorder %s17, 0
    %p128 = por %p126, %p127
    %s129 = ssub.s32 %s11, %s18
    %p130 = scmp.eq.s32.totalorder %s129, 0
    %s132 = sadd.s32 %s131, 1
    %s133 = scalar_select %p130, %s131, %s132
    %p136 = pneg %p130
    %p137 = scmp.eq.s32.totalorder %s11, 1
    %p138 = por %p136, %p137
    %p139 = scmp.ne.s32.totalorder %s131, %s134
    %p140 = scmp.eq.s32.totalorder %s11, 0
    %p141 = por %p139, %p140
    %p142 = scmp.ne.s32.totalorder %s131, %s134
    %p143 = scmp.eq.s32.totalorder %s16, 1
    %p144 = por %p142, %p143
    %p145 = scmp.ne.s32.totalorder %s134, %s135
    %p146 = scmp.eq.s32.totalorder %s16, 0
    %p147 = por %p145, %p146
    %p148 = scmp.ne.s32.totalorder %s134, %s135
    %p149 = scmp.eq.s32.totalorder %s17, 1
    %p150 = por %p148, %p149
    %p152 = scmp.ne.s32.totalorder %s135, %s151
    %p153 = scmp.eq.s32.totalorder %s17, 0
    %p154 = por %p152, %p153
    %p155 = scmp.le.s32.totalorder 1, %s11
    %p156 = scmp.lt.s32.totalorder %s11, 3
    %p157 = pnand %p155, %p156
    %p158 = pneg %p157
    // Predicated region
    $region9: #{tpu_custom_call.1} parent=5 // pred_check
      _
    $region10: #{tpu_custom_call.1} parent=5 // pred_check_branch
      %160 = sbr.rel (%p157) target = $region12
    $region11: #{tpu_custom_call.1} parent=5 // pred_region
      %s161 = ssub.s32 %s11, 1
      // Predicated region
      $region13: #{tpu_custom_call.1} parent=11 // pred_check
        %p162 = pneg %p58
      $region14: #{tpu_custom_call.1} parent=11 // pred_check_branch
        %164 = sbr.rel (%p162) target = $region16
      $region15: #{tpu_custom_call.1} parent=11 // pred_region
        _
      $region16: #{tpu_custom_call.1} parent=11 // pred_fallthru
        _
      // Predicated region
      $region17: #{tpu_custom_call.1} parent=11 // pred_check
        %p165 = pneg %p79
      $region18: #{tpu_custom_call.1} parent=11 // pred_check_branch
        %167 = sbr.rel (%p165) target = $region20
      $region19: #{tpu_custom_call.1} parent=11 // pred_region
        _
      $region20: #{tpu_custom_call.1} parent=11 // pred_fallthru
        _
      // Predicated region
      $region21: #{tpu_custom_call.1} parent=11 // pred_check
        %p168 = pneg %p100
      $region22: #{tpu_custom_call.1} parent=11 // pred_check_branch
        %170 = sbr.rel (%p168) target = $region24
      $region23: #{tpu_custom_call.1} parent=11 // pred_region
        _
      $region24: #{tpu_custom_call.1} parent=11 // pred_fallthru
        _
      // Predicated region
      $region25: #{tpu_custom_call.1} parent=11 // pred_check
        %p171 = pneg %p121
      $region26: #{tpu_custom_call.1} parent=11 // pred_check_branch
        %173 = sbr.rel (%p171) target = $region28
      $region27: #{tpu_custom_call.1} parent=11 // pred_region
        _
      $region28: #{tpu_custom_call.1} parent=11 // pred_fallthru
        _
    $region12: #{tpu_custom_call.1} parent=5 // pred_fallthru
      _
    %p174 = scmp.lt.s32.totalorder %s11, 2
    // Predicated region
    $region29: #{tpu_custom_call.1} parent=5 // pred_check
      %p175 = pneg %p174
    $region30: #{tpu_custom_call.1} parent=5 // pred_check_branch
      %177 = sbr.rel (%p175) target = $region32
    $region31: #{tpu_custom_call.1} parent=5 // pred_region
      // Predicated region
      $region33: #{tpu_custom_call.1} parent=31 // pred_check
        %p178 = pneg %p31
      $region34: #{tpu_custom_call.1} parent=31 // pred_check_branch
        %180 = sbr.rel (%p178) target = $region36
      $region35: #{tpu_custom_call.1} parent=31 // pred_region
        %s181 = smul.u32 2, %s11
        %p182 = scmp.lt.s32.totalorder %s181, 3
        %s183 = scalar_select %p182, %s181, 3
        %s184 = smul.addr %s183, 5
        %s185 = smul.addr %s184, 8
        %s186 = scalar_lea.vmem %s0, %s185
        %s187 = smul.u32 2, %s11
      $region36: #{tpu_custom_call.1} parent=31 // pred_fallthru
        _
    $region32: #{tpu_custom_call.1} parent=5 // pred_fallthru
      _
    %p188 = scmp.le.s32.totalorder 1, %s11
    %p189 = scmp.lt.s32.totalorder %s11, 3
    %p190 = pnand %p188, %p189
    %p191 = pneg %p190
    // Predicated region
    $region37: #{tpu_custom_call.1} parent=5 // pred_check
      _
    $region38: #{tpu_custom_call.1} parent=5 // pred_check_branch
      %193 = sbr.rel (%p190) target = $region40
    $region39: #{tpu_custom_call.1} parent=5 // pred_region
      %s194 = ssub.s32 %s11, 1
      %s195 = smul.u32 2, %s16
      %p196 = scmp.lt.s32.totalorder %s195, 3
      %s197 = scalar_select %p196, %s195, 3
      %s198 = smul.addr %s197, 5
      %s199 = smul.addr %s198, 8
      %s200 = scalar_lea.vmem %s0, %s199
      %p201 = pneg %p37
      %p202 = pneg %p34
      %p203 = pneg %p58
      %p204 = pneg %p55
      %p205 = pneg %p79
      %p206 = pneg %p76
      %p207 = pneg %p100
      %p208 = pneg %p97
      %p209 = pneg %p121
      %p210 = pneg %p118
      %p211 = pneg %p147
      %p212 = pneg %p144
      %s213 = smul.u32 2, %s16
      %p214 = scmp.lt.s32.totalorder %s213, 3
      %s215 = scalar_select %p214, %s213, 3
      %s216 = smul.addr %s215, 5
      %s217 = smul.addr %s216, 8
      %s218 = scalar_lea.vmem %s5, %s217
      %s219 = smul.u32 2, %s16
      %p220 = scmp.lt.s32.totalorder %s219, 3
      %s221 = scalar_select %p220, %s219, 3
      %s222 = smul.addr %s221, 5
      %s223 = smul.addr %s222, 8
      %s224 = scalar_lea.vmem %s0, %s223
      %s225 = smul.u32 2, %s16
      %s226 = smul.u32 2, %s16
      %p227 = scmp.lt.s32.totalorder %s226, 3
      %s228 = scalar_select %p227, %s226, 3
      %s229 = smul.addr %s228, 5
      %s230 = smul.addr %s229, 8
      %s231 = scalar_lea.vmem %s5, %s230
      %s232 = smul.u32 2, %s16
      %v234 = vld [vmem:[%s224] sm:$0xff]
      %v235 = vld [vmem:[%s224 + $0x8] sm:$0xff]
      %v236 = vld [vmem:[%s224 + $0x10] sm:$0xff]
      %v237 = vld [vmem:[%s224 + $0x18] sm:$0xff]
      %v238 = vld [vmem:[%s224 + $0x20] sm:$0xff]
      %v239 = vld [vmem:[%s224 + $0x28] sm:$0xff]
      %v240 = vld [vmem:[%s224 + $0x30] sm:$0xff]
      %v241 = vld [vmem:[%s224 + $0x38] sm:$0xff]
      %v242 = vld [vmem:[%s224 + $0x40] sm:$0xff]
      %v243 = vld [vmem:[%s224 + $0x48] sm:$0xff]
      %v244 = vpack.c.bf16 %v235, %v234
      %v245 = vpack.c.bf16 %v237, %v236
      %v246 = vpack.c.bf16 %v239, %v238
      %v247 = vpack.c.bf16 %v241, %v240
      %v248 = vpack.c.bf16 %v243, %v242
      %v249 = vld [vmem:[%s1] sm:$0xf]
      %v250 = vld [vmem:[%s1 + $0x4] sm:$0xf]
      %v251 = vld [vmem:[%s1 + $0x8] sm:$0xf]
      %v252 = vld [vmem:[%s1 + $0xc] sm:$0xf]
      %v253 = vld [vmem:[%s2] sm:$0x1]
      %v255 = vlaneseq
      %v256 = vshrl.u32 %v255, 7
      %v257 = vsub.s32 0, %v256
      %v258 = vrot.slane %v253, %v257
      %v264 = vunpack.c.l.b16 %v249
      %v265 = vunpack.c.l.b16 %v250
      %v266 = vunpack.c.l.b16 %v251
      %v267 = vunpack.c.l.b16 %v252
      %v268 = vpack.c.b16 %v265, %v264
      %v269 = vpack.c.b16 %v267, %v266
      %vm272 = vcmask 261120
      %v274 = vsel %vm272, %v244, 0
      %v277 = vsel %vm272, %v245, 0
      %v280 = vsel %vm272, %v246, 0
      %v283 = vsel %vm272, %v247, 0
      %v286 = vsel %vm272, %v248, 0
      %288 = vmatprep.subr.bf16.mxu0 0
      %289 = vmatpush1.bf16.msra.mxu0 0
      %290 = vmatprep.subr.bf16.mxu0 0
      %291 = vmatpush1.bf16.msra.mxu0 0
      %292 = vmatprep.subr.bf16.mxu0 0
      %293 = vmatpush1.bf16.msra.mxu0 0
      %294 = vmatprep.subr.bf16.mxu0 0
      %295 = vmatpush1.bf16.msra.mxu0 0
      %296 = vmatprep.subr.bf16.mxu0 0
      %297 = vmatpush1.bf16.msra.mxu0 0
      %298 = vmatprep.subr.bf16.mxu0 0
      %299 = vmatpush1.bf16.msra.mxu0 0
      %300 = vmatprep.subr.bf16.mxu0 0
      %301 = vmatpush1.bf16.msra.mxu0 %v269
      %302 = vmatprep.subr.bf16.mxu0 0
      %303 = vmatpush1.bf16.msra.mxu0 %v268
      %304 = vmatprep.subr.bf16.mxu0 0
      %305 = vmatpush2.bf16.msra.mxu0 0
      %306 = vmatprep.subr.bf16.mxu0 0
      %307 = vmatpush2.bf16.msra.mxu0 0
      %308 = vmatprep.subr.bf16.mxu0 0
      %309 = vmatpush2.bf16.msra.mxu0 0
      %310 = vmatprep.subr.bf16.mxu0 0
      %311 = vmatpush2.bf16.msra.mxu0 0
      %312 = vmatprep.subr.bf16.mxu0 0
      %313 = vmatpush2.bf16.msra.mxu0 0
      %314 = vmatprep.subr.bf16.mxu0 0
      %315 = vmatpush2.bf16.msra.mxu0 0
      %316 = vmatprep.subr.bf16.mxu0 0
      %317 = vmatpush2.bf16.msra.mxu0 0
      %318 = vmatprep.subr.bf16.mxu0 0
      %319 = vmatpush2.bf16.msra.mxu0 0
      %320 = vmatprep.mubr.bf16.mxu0 0
      %321 = vmatmul.mubr.bf16.gmra.mxu0 %v274
      %v322 = vpop.f32.mrf.mxu0
      %v323 = vadd.f32 %v258, %v322
      %v324 = vpop.f32.mrf.mxu0
      %v325 = vpop.f32.mrf.mxu0
      %v326 = vadd.f32 %v258, %v325
      %v327 = vpop.f32.mrf.mxu0
      %328 = vmatprep.mubr.bf16.mxu0 0
      %329 = vmatmul.mubr.bf16.gmra.mxu0 %v277
      %v330 = vpop.f32.mrf.mxu0
      %v331 = vadd.f32 %v258, %v330
      %v332 = vpop.f32.mrf.mxu0
      %v333 = vpop.f32.mrf.mxu0
      %v334 = vadd.f32 %v258, %v333
      %v335 = vpop.f32.mrf.mxu0
      %336 = vmatprep.mubr.bf16.mxu0 0
      %337 = vmatmul.mubr.bf16.gmra.mxu0 %v280
      %v338 = vpop.f32.mrf.mxu0
      %v339 = vadd.f32 %v258, %v338
      %v340 = vpop.f32.mrf.mxu0
      %v341 = vpop.f32.mrf.mxu0
      %v342 = vadd.f32 %v258, %v341
      %v343 = vpop.f32.mrf.mxu0
      %344 = vmatprep.mubr.bf16.mxu0 0
      %345 = vmatmul.mubr.bf16.gmra.mxu0 %v283
      %v346 = vpop.f32.mrf.mxu0
      %v347 = vadd.f32 %v258, %v346
      %v348 = vpop.f32.mrf.mxu0
      %v349 = vpop.f32.mrf.mxu0
      %v350 = vadd.f32 %v258, %v349
      %v351 = vpop.f32.mrf.mxu0
      %352 = vmatprep.mubr.bf16.mxu0 0
      %353 = vmatmul.mubr.bf16.gmra.mxu0 %v286
      %v354 = vpop.f32.mrf.mxu0
      %v355 = vadd.f32 %v258, %v354
      %v356 = vpop.f32.mrf.mxu0
      %v357 = vpop.f32.mrf.mxu0
      %v358 = vadd.f32 %v258, %v357
      %v359 = vpop.f32.mrf.mxu0
      %360 = vdwg.mxu0
      %v361 = vpack.c.bf16 %v326, %v323
      %v362 = vpack.c.bf16 %v334, %v331
      %v363 = vpack.c.bf16 %v339, %v339
      %v364 = vpack.c.bf16 %v347, %v342
      %v365 = vpack.c.bf16 %v355, %v350
      %v366 = vpack.c.bf16 %v358, %v358
      %370 = vrot.lane.b32.xlu0 %v361, 96
      %v371 = vpop.permute.xlu0 %370
      %372 = vrot.lane.b32.xlu0 %v362, 96
      %v373 = vpop.permute.xlu0 %372
      %374 = vrot.lane.b32.xlu0 %v363, 96
      %v375 = vpop.permute.xlu0 %374
      %vm376 = vcmask 64512
      %v378 = vsel %vm376, %v361, 0
      %v381 = vsel %vm376, %v362, 0
      %v384 = vsel %vm376, %v363, 0
      %v387 = vsel %vm376, %v371, 0
      %v390 = vsel %vm376, %v373, 0
      %v393 = vsel %vm376, %v375, 0
      %395 = vmatprep.subr.bf16.mxu0 0
      %396 = vmatpush1.bf16.xpose.msra.mxu0 0
      %397 = vmatprep.subr.bf16.mxu0 0
      %398 = vmatpush1.bf16.xpose.msra.mxu0 0
      %399 = vmatprep.subr.bf16.mxu0 0
      %400 = vmatpush1.bf16.xpose.msra.mxu0 0
      %401 = vmatprep.subr.bf16.mxu0 0
      %402 = vmatpush1.bf16.xpose.msra.mxu0 0
      %403 = vmatprep.subr.bf16.mxu0 0
      %404 = vmatpush1.bf16.xpose.msra.mxu0 0
      %405 = vmatprep.subr.bf16.mxu0 0
      %406 = vmatpush1.bf16.xpose.msra.mxu0 %v393
      %407 = vmatprep.subr.bf16.mxu0 0
      %408 = vmatpush1.bf16.xpose.msra.mxu0 %v390
      %409 = vmatprep.subr.bf16.mxu0 0
      %410 = vmatpush1.bf16.xpose.msra.mxu0 %v387
      %411 = vmatprep.subr.bf16.mxu0 0
      %412 = vmatpush2.bf16.xpose.msra.mxu0 0
      %413 = vmatprep.subr.bf16.mxu0 0
      %414 = vmatpush2.bf16.xpose.msra.mxu0 0
      %415 = vmatprep.subr.bf16.mxu0 0
      %416 = vmatpush2.bf16.xpose.msra.mxu0 0
      %417 = vmatprep.subr.bf16.mxu0 0
      %418 = vmatpush2.bf16.xpose.msra.mxu0 0
      %419 = vmatprep.subr.bf16.mxu0 0
      %420 = vmatpush2.bf16.xpose.msra.mxu0 0
      %421 = vmatprep.subr.bf16.mxu0 0
      %422 = vmatpush2.bf16.xpose.msra.mxu0 0
      %423 = vmatprep.subr.bf16.mxu0 0
      %424 = vmatpush2.bf16.xpose.msra.mxu0 0
      %425 = vmatprep.subr.bf16.mxu0 0
      %426 = vmatpush2.bf16.xpose.msra.mxu0 0
      %427 = vmatprep.mubr.bf16.mxu0 0
      %428 = vmatmul.mubr.bf16.gmra.mxu0 %v378
      %v429 = vpop.f32.mrf.mxu0
      %v430 = vadd.f32 0.0, %v429
      %v431 = vpop.f32.mrf.mxu0
      %v432 = vpop.f32.mrf.mxu0
      %v433 = vadd.f32 0.0, %v432
      %v434 = vpop.f32.mrf.mxu0
      %435 = vmatprep.mubr.bf16.mxu0 0
      %436 = vmatmul.mubr.bf16.gmra.mxu0 %v381
      %v437 = vpop.f32.mrf.mxu0
      %v438 = vadd.f32 0.0, %v437
      %v439 = vpop.f32.mrf.mxu0
      %v440 = vpop.f32.mrf.mxu0
      %v441 = vadd.f32 0.0, %v440
      %v442 = vpop.f32.mrf.mxu0
      %443 = vmatprep.mubr.bf16.mxu0 0
      %444 = vmatmul.mubr.bf16.gmra.mxu0 %v384
      %v445 = vpop.f32.mrf.mxu0
      %v446 = vadd.f32 0.0, %v445
      %v447 = vpop.f32.mrf.mxu0
      %v448 = vpop.f32.mrf.mxu0
      %v449 = vpop.f32.mrf.mxu0
      %450 = vdwg.mxu0
      %454 = vrot.lane.b32.xlu0 %v364, 96
      %v455 = vpop.permute.xlu0 %454
      %456 = vrot.lane.b32.xlu0 %v365, 96
      %v457 = vpop.permute.xlu0 %456
      %458 = vrot.lane.b32.xlu0 %v366, 96
      %v459 = vpop.permute.xlu0 %458
      %v461 = vsel %vm376, %v364, 0
      %v464 = vsel %vm376, %v365, 0
      %v467 = vsel %vm376, %v366, 0
      %v470 = vsel %vm376, %v455, 0
      %v473 = vsel %vm376, %v457, 0
      %v476 = vsel %vm376, %v459, 0
      %478 = vmatprep.subr.bf16.mxu0 0
      %479 = vmatpush1.bf16.xpose.msra.mxu0 0
      %480 = vmatprep.subr.bf16.mxu0 0
      %481 = vmatpush1.bf16.xpose.msra.mxu0 0
      %482 = vmatprep.subr.bf16.mxu0 0
      %483 = vmatpush1.bf16.xpose.msra.mxu0 0
      %484 = vmatprep.subr.bf16.mxu0 0
      %485 = vmatpush1.bf16.xpose.msra.mxu0 0
      %486 = vmatprep.subr.bf16.mxu0 0
      %487 = vmatpush1.bf16.xpose.msra.mxu0 0
      %488 = vmatprep.subr.bf16.mxu0 0
      %489 = vmatpush1.bf16.xpose.msra.mxu0 %v476
      %490 = vmatprep.subr.bf16.mxu0 0
      %491 = vmatpush1.bf16.xpose.msra.mxu0 %v473
      %492 = vmatprep.subr.bf16.mxu0 0
      %493 = vmatpush1.bf16.xpose.msra.mxu0 %v470
      %494 = vmatprep.subr.bf16.mxu0 0
      %495 = vmatpush2.bf16.xpose.msra.mxu0 0
      %496 = vmatprep.subr.bf16.mxu0 0
      %497 = vmatpush2.bf16.xpose.msra.mxu0 0
      %498 = vmatprep.subr.bf16.mxu0 0
      %499 = vmatpush2.bf16.xpose.msra.mxu0 0
      %500 = vmatprep.subr.bf16.mxu0 0
      %501 = vmatpush2.bf16.xpose.msra.mxu0 0
      %502 = vmatprep.subr.bf16.mxu0 0
      %503 = vmatpush2.bf16.xpose.msra.mxu0 0
      %504 = vmatprep.subr.bf16.mxu0 0
      %505 = vmatpush2.bf16.xpose.msra.mxu0 0
      %506 = vmatprep.subr.bf16.mxu0 0
      %507 = vmatpush2.bf16.xpose.msra.mxu0 0
      %508 = vmatprep.subr.bf16.mxu0 0
      %509 = vmatpush2.bf16.xpose.msra.mxu0 0
      %510 = vmatprep.mubr.bf16.mxu0 0
      %511 = vmatmul.mubr.bf16.gmra.mxu0 %v461
      %v512 = vpop.f32.mrf.mxu0
      %v513 = vadd.f32 0.0, %v512
      %v514 = vpop.f32.mrf.mxu0
      %v515 = vpop.f32.mrf.mxu0
      %v516 = vadd.f32 0.0, %v515
      %v517 = vpop.f32.mrf.mxu0
      %518 = vmatprep.mubr.bf16.mxu0 0
      %519 = vmatmul.mubr.bf16.gmra.mxu0 %v464
      %v520 = vpop.f32.mrf.mxu0
      %v521 = vadd.f32 0.0, %v520
      %v522 = vpop.f32.mrf.mxu0
      %v523 = vpop.f32.mrf.mxu0
      %v524 = vadd.f32 0.0, %v523
      %v525 = vpop.f32.mrf.mxu0
      %526 = vmatprep.mubr.bf16.mxu0 0
      %527 = vmatmul.mubr.bf16.gmra.mxu0 %v467
      %v528 = vpop.f32.mrf.mxu0
      %v529 = vadd.f32 0.0, %v528
      %v530 = vpop.f32.mrf.mxu0
      %v531 = vpop.f32.mrf.mxu0
      %v532 = vpop.f32.mrf.mxu0
      %533 = vdwg.mxu0
      %vm534 = vcmask 326656
      %v535 = vsel %vm534, %v430, -inf
      %536 = vmax.xlane.f32.xlu0 %v535
      %v537 = vpop.xlane.xlu0 %536
      %v538 = vsel %vm534, %v433, -inf
      %539 = vmax.xlane.f32.xlu0 %v538
      %v540 = vpop.xlane.xlu0 %539
      %v541 = vsel %vm534, %v438, -inf
      %542 = vmax.xlane.f32.xlu0 %v541
      %v543 = vpop.xlane.xlu0 %542
      %v544 = vsel %vm534, %v441, -inf
      %545 = vmax.xlane.f32.xlu0 %v544
      %v546 = vpop.xlane.xlu0 %545
      %v547 = vsel %vm534, %v446, -inf
      %548 = vmax.xlane.f32.xlu0 %v547
      %v549 = vpop.xlane.xlu0 %548
      %v550 = vsel %vm534, %v513, -inf
      %551 = vmax.xlane.f32.xlu0 %v550
      %v552 = vpop.xlane.xlu0 %551
      %v553 = vsel %vm534, %v516, -inf
      %554 = vmax.xlane.f32.xlu0 %v553
      %v555 = vpop.xlane.xlu0 %554
      %v556 = vsel %vm534, %v521, -inf
      %557 = vmax.xlane.f32.xlu0 %v556
      %v558 = vpop.xlane.xlu0 %557
      %v559 = vsel %vm534, %v524, -inf
      %560 = vmax.xlane.f32.xlu0 %v559
      %v561 = vpop.xlane.xlu0 %560
      %v562 = vsel %vm534, %v529, -inf
      %563 = vmax.xlane.f32.xlu0 %v562
      %v564 = vpop.xlane.xlu0 %563
      %v565 = vsub.f32 %v430, %v537
      %v566 = vsub.f32 %v433, %v540
      %v567 = vsub.f32 %v438, %v543
      %v568 = vsub.f32 %v441, %v546
      %v569 = vsub.f32 %v446, %v549
      %v570 = vsub.f32 %v513, %v552
      %v571 = vsub.f32 %v516, %v555
      %v572 = vsub.f32 %v521, %v558
      %v573 = vsub.f32 %v524, %v561
      %v574 = vsub.f32 %v529, %v564
      %v575 = vmul.f32 %v565, 1.442695
      %v576 = vpow.pop %v575
      %v577 = vmul.f32 %v566, 1.442695
      %v578 = vpow.pop %v577
      %v579 = vmul.f32 %v567, 1.442695
      %v580 = vpow.pop %v579
      %v581 = vmul.f32 %v568, 1.442695
      %v582 = vpow.pop %v581
      %v583 = vmul.f32 %v569, 1.442695
      %v584 = vpow.pop %v583
      %v585 = vmul.f32 %v570, 1.442695
      %v586 = vpow.pop %v585
      %v587 = vmul.f32 %v571, 1.442695
      %v588 = vpow.pop %v587
      %v589 = vmul.f32 %v572, 1.442695
      %v590 = vpow.pop %v589
      %v591 = vmul.f32 %v573, 1.442695
      %v592 = vpow.pop %v591
      %v593 = vmul.f32 %v574, 1.442695
      %v594 = vpow.pop %v593
      %v595 = vsel %vm534, %v576, 0.0
      %596 = vadd.xlane.f32.xlu0 %v595
      %v597 = vpop.xlane.xlu0 %596
      %v598 = vsel %vm534, %v578, 0.0
      %599 = vadd.xlane.f32.xlu0 %v598
      %v600 = vpop.xlane.xlu0 %599
      %v601 = vsel %vm534, %v580, 0.0
      %602 = vadd.xlane.f32.xlu0 %v601
      %v603 = vpop.xlane.xlu0 %602
      %v604 = vsel %vm534, %v582, 0.0
      %605 = vadd.xlane.f32.xlu0 %v604
      %v606 = vpop.xlane.xlu0 %605
      %v607 = vsel %vm534, %v584, 0.0
      %608 = vadd.xlane.f32.xlu0 %v607
      %v609 = vpop.xlane.xlu0 %608
      %v610 = vsel %vm534, %v586, 0.0
      %611 = vadd.xlane.f32.xlu0 %v610
      %v612 = vpop.xlane.xlu0 %611
      %v613 = vsel %vm534, %v588, 0.0
      %614 = vadd.xlane.f32.xlu0 %v613
      %v615 = vpop.xlane.xlu0 %614
      %v616 = vsel %vm534, %v590, 0.0
      %617 = vadd.xlane.f32.xlu0 %v616
      %v618 = vpop.xlane.xlu0 %617
      %v619 = vsel %vm534, %v592, 0.0
      %620 = vadd.xlane.f32.xlu0 %v619
      %v621 = vpop.xlane.xlu0 %620
      %v622 = vsel %vm534, %v594, 0.0
      %623 = vadd.xlane.f32.xlu0 %v622
      %v624 = vpop.xlane.xlu0 %623
      %v625 = vrcp.pop %v597
      %v626 = vrcp.pop %v600
      %v627 = vrcp.pop %v603
      %v628 = vrcp.pop %v606
      %v629 = vrcp.pop %v609
      %v630 = vrcp.pop %v612
      %v631 = vrcp.pop %v615
      %v632 = vrcp.pop %v618
      %v633 = vrcp.pop %v621
      %v634 = vrcp.pop %v624
      %v635 = vmul.f32 %v576, %v625
      %v636 = vmul.f32 %v578, %v626
      %v637 = vmul.f32 %v580, %v627
      %v638 = vmul.f32 %v582, %v628
      %v639 = vmul.f32 %v584, %v629
      %v640 = vmul.f32 %v586, %v630
      %v641 = vmul.f32 %v588, %v631
      %v642 = vmul.f32 %v590, %v632
      %v643 = vmul.f32 %v592, %v633
      %v644 = vmul.f32 %v594, %v634
      %v645 = vpack.c.bf16 %v636, %v635
      %v646 = vpack.c.bf16 %v638, %v637
      %v647 = vpack.c.bf16 %v639, %v639
      %v648 = vpack.c.bf16 %v641, %v640
      %v649 = vpack.c.bf16 %v643, %v642
      %v650 = vpack.c.bf16 %v644, %v644
      %651 = vrot.lane.b32.xlu0 %v361, 64
      %v652 = vpop.permute.xlu0 %651
      %653 = vrot.lane.b32.xlu0 %v362, 64
      %v654 = vpop.permute.xlu0 %653
      %655 = vrot.lane.b32.xlu0 %v363, 64
      %v656 = vpop.permute.xlu0 %655
      %v660 = vsel %vm534, %v645, 0
      %v663 = vsel %vm534, %v646, 0
      %v666 = vsel %vm534, %v647, 0
      %vm668 = vcmask 1043456
      %v670 = vsel %vm668, %v656, 0
      %672 = vmatprep.subr.bf16.mxu0 0
      %673 = vmatpush1.bf16.msra.mxu0 0
      %674 = vmatprep.subr.bf16.mxu0 0
      %675 = vmatpush1.bf16.msra.mxu0 0
      %676 = vmatprep.subr.bf16.mxu0 0
      %677 = vmatpush1.bf16.msra.mxu0 0
      %678 = vmatprep.subr.bf16.mxu0 0
      %679 = vmatpush1.bf16.msra.mxu0 0
      %680 = vmatprep.subr.bf16.mxu0 0
      %681 = vmatpush1.bf16.msra.mxu0 0
      %682 = vmatprep.subr.bf16.mxu0 0
      %683 = vmatpush1.bf16.msra.mxu0 %v670
      %684 = vmatprep.subr.bf16.mxu0 0
      %685 = vmatpush1.bf16.msra.mxu0 %v654
      %686 = vmatprep.subr.bf16.mxu0 0
      %687 = vmatpush1.bf16.msra.mxu0 %v652
      %688 = vmatprep.subr.bf16.mxu0 0
      %689 = vmatpush2.bf16.msra.mxu0 0
      %690 = vmatprep.subr.bf16.mxu0 0
      %691 = vmatpush2.bf16.msra.mxu0 0
      %692 = vmatprep.subr.bf16.mxu0 0
      %693 = vmatpush2.bf16.msra.mxu0 0
      %694 = vmatprep.subr.bf16.mxu0 0
      %695 = vmatpush2.bf16.msra.mxu0 0
      %696 = vmatprep.subr.bf16.mxu0 0
      %697 = vmatpush2.bf16.msra.mxu0 0
      %698 = vmatprep.subr.bf16.mxu0 0
      %699 = vmatpush2.bf16.msra.mxu0 0
      %700 = vmatprep.subr.bf16.mxu0 0
      %701 = vmatpush2.bf16.msra.mxu0 0
      %702 = vmatprep.subr.bf16.mxu0 0
      %703 = vmatpush2.bf16.msra.mxu0 0
      %704 = vmatprep.mubr.bf16.mxu0 0
      %705 = vmatmul.mubr.bf16.gmra.mxu0 %v660
      %v706 = vpop.f32.mrf.mxu0
      %v707 = vadd.f32 0.0, %v706
      %v708 = vpop.f32.mrf.mxu0
      %v709 = vpop.f32.mrf.mxu0
      %v710 = vadd.f32 0.0, %v709
      %v711 = vpop.f32.mrf.mxu0
      %712 = vmatprep.mubr.bf16.mxu0 0
      %713 = vmatmul.mubr.bf16.gmra.mxu0 %v663
      %v714 = vpop.f32.mrf.mxu0
      %v715 = vadd.f32 0.0, %v714
      %v716 = vpop.f32.mrf.mxu0
      %v717 = vpop.f32.mrf.mxu0
      %v718 = vadd.f32 0.0, %v717
      %v719 = vpop.f32.mrf.mxu0
      %720 = vmatprep.mubr.bf16.mxu0 0
      %721 = vmatmul.mubr.bf16.gmra.mxu0 %v666
      %v722 = vpop.f32.mrf.mxu0
      %v723 = vadd.f32 0.0, %v722
      %v724 = vpop.f32.mrf.mxu0
      %v725 = vpop.f32.mrf.mxu0
      %v726 = vpop.f32.mrf.mxu0
      %727 = vdwg.mxu0
      %728 = vrot.lane.b32.xlu0 %v364, 64
      %v729 = vpop.permute.xlu0 %728
      %730 = vrot.lane.b32.xlu0 %v365, 64
      %v731 = vpop.permute.xlu0 %730
      %732 = vrot.lane.b32.xlu0 %v366, 64
      %v733 = vpop.permute.xlu0 %732
      %v737 = vsel %vm534, %v648, 0
      %v740 = vsel %vm534, %v649, 0
      %v743 = vsel %vm534, %v650, 0
      %v746 = vsel %vm668, %v733, 0
      %748 = vmatprep.subr.bf16.mxu0 0
      %749 = vmatpush1.bf16.msra.mxu0 0
      %750 = vmatprep.subr.bf16.mxu0 0
      %751 = vmatpush1.bf16.msra.mxu0 0
      %752 = vmatprep.subr.bf16.mxu0 0
      %753 = vmatpush1.bf16.msra.mxu0 0
      %754 = vmatprep.subr.bf16.mxu0 0
      %755 = vmatpush1.bf16.msra.mxu0 0
      %756 = vmatprep.subr.bf16.mxu0 0
      %757 = vmatpush1.bf16.msra.mxu0 0
      %758 = vmatprep.subr.bf16.mxu0 0
      %759 = vmatpush1.bf16.msra.mxu0 %v746
      %760 = vmatprep.subr.bf16.mxu0 0
      %761 = vmatpush1.bf16.msra.mxu0 %v731
      %762 = vmatprep.subr.bf16.mxu0 0
      %763 = vmatpush1.bf16.msra.mxu0 %v729
      %764 = vmatprep.subr.bf16.mxu0 0
      %765 = vmatpush2.bf16.msra.mxu0 0
      %766 = vmatprep.subr.bf16.mxu0 0
      %767 = vmatpush2.bf16.msra.mxu0 0
      %768 = vmatprep.subr.bf16.mxu0 0
      %769 = vmatpush2.bf16.msra.mxu0 0
      %770 = vmatprep.subr.bf16.mxu0 0
      %771 = vmatpush2.bf16.msra.mxu0 0
      %772 = vmatprep.subr.bf16.mxu0 0
      %773 = vmatpush2.bf16.msra.mxu0 0
      %774 = vmatprep.subr.bf16.mxu0 0
      %775 = vmatpush2.bf16.msra.mxu0 0
      %776 = vmatprep.subr.bf16.mxu0 0
      %777 = vmatpush2.bf16.msra.mxu0 0
      %778 = vmatprep.subr.bf16.mxu0 0
      %779 = vmatpush2.bf16.msra.mxu0 0
      %780 = vmatprep.mubr.bf16.mxu0 0
      %781 = vmatmul.mubr.bf16.gmra.mxu0 %v737
      %v782 = vpop.f32.mrf.mxu0
      %v783 = vadd.f32 0.0, %v782
      %v784 = vpop.f32.mrf.mxu0
      %v785 = vpop.f32.mrf.mxu0
      %v786 = vadd.f32 0.0, %v785
      %v787 = vpop.f32.mrf.mxu0
      %788 = vmatprep.mubr.bf16.mxu0 0
      %789 = vmatmul.mubr.bf16.gmra.mxu0 %v740
      %v790 = vpop.f32.mrf.mxu0
      %v791 = vadd.f32 0.0, %v790
      %v792 = vpop.f32.mrf.mxu0
      %v793 = vpop.f32.mrf.mxu0
      %v794 = vadd.f32 0.0, %v793
      %v795 = vpop.f32.mrf.mxu0
      %796 = vmatprep.mubr.bf16.mxu0 0
      %797 = vmatmul.mubr.bf16.gmra.mxu0 %v743
      %v798 = vpop.f32.mrf.mxu0
      %v799 = vadd.f32 0.0, %v798
      %v800 = vpop.f32.mrf.mxu0
      %v801 = vpop.f32.mrf.mxu0
      %v802 = vpop.f32.mrf.mxu0
      %803 = vdwg.mxu0
      %804 = vrot.lane.b32.xlu0 %v361, 120
      %v805 = vpop.permute.xlu0 %804
      %806 = vrot.lane.b32.xlu0 %v362, 120
      %v807 = vpop.permute.xlu0 %806
      %808 = vrot.lane.b32.xlu0 %v363, 120
      %v809 = vpop.permute.xlu0 %808
      %810 = vrot.lane.b32.xlu0 %v361, 88
      %v811 = vpop.permute.xlu0 %810
      %812 = vrot.lane.b32.xlu0 %v362, 88
      %v813 = vpop.permute.xlu0 %812
      %814 = vrot.lane.b32.xlu0 %v363, 88
      %v815 = vpop.permute.xlu0 %814
      %v817 = vsel %vm376, %v805, 0
      %v820 = vsel %vm376, %v807, 0
      %v823 = vsel %vm376, %v809, 0
      %v826 = vsel %vm376, %v811, 0
      %v829 = vsel %vm376, %v813, 0
      %v832 = vsel %vm376, %v815, 0
      %834 = vmatprep.subr.bf16.mxu0 0
      %835 = vmatpush1.bf16.xpose.msra.mxu0 0
      %836 = vmatprep.subr.bf16.mxu0 0
      %837 = vmatpush1.bf16.xpose.msra.mxu0 0
      %838 = vmatprep.subr.bf16.mxu0 0
      %839 = vmatpush1.bf16.xpose.msra.mxu0 0
      %840 = vmatprep.subr.bf16.mxu0 0
      %841 = vmatpush1.bf16.xpose.msra.mxu0 0
      %842 = vmatprep.subr.bf16.mxu0 0
      %843 = vmatpush1.bf16.xpose.msra.mxu0 0
      %844 = vmatprep.subr.bf16.mxu0 0
      %845 = vmatpush1.bf16.xpose.msra.mxu0 %v832
      %846 = vmatprep.subr.bf16.mxu0 0
      %847 = vmatpush1.bf16.xpose.msra.mxu0 %v829
      %848 = vmatprep.subr.bf16.mxu0 0
      %849 = vmatpush1.bf16.xpose.msra.mxu0 %v826
      %850 = vmatprep.subr.bf16.mxu0 0
      %851 = vmatpush2.bf16.xpose.msra.mxu0 0
      %852 = vmatprep.subr.bf16.mxu0 0
      %853 = vmatpush2.bf16.xpose.msra.mxu0 0
      %854 = vmatprep.subr.bf16.mxu0 0
      %855 = vmatpush2.bf16.xpose.msra.mxu0 0
      %856 = vmatprep.subr.bf16.mxu0 0
      %857 = vmatpush2.bf16.xpose.msra.mxu0 0
      %858 = vmatprep.subr.bf16.mxu0 0
      %859 = vmatpush2.bf16.xpose.msra.mxu0 0
      %860 = vmatprep.subr.bf16.mxu0 0
      %861 = vmatpush2.bf16.xpose.msra.mxu0 0
      %862 = vmatprep.subr.bf16.mxu0 0
      %863 = vmatpush2.bf16.xpose.msra.mxu0 0
      %864 = vmatprep.subr.bf16.mxu0 0
      %865 = vmatpush2.bf16.xpose.msra.mxu0 0
      %866 = vmatprep.mubr.bf16.mxu0 0
      %867 = vmatmul.mubr.bf16.gmra.mxu0 %v817
      %v868 = vpop.f32.mrf.mxu0
      %v869 = vadd.f32 0.0, %v868
      %v870 = vpop.f32.mrf.mxu0
      %v871 = vpop.f32.mrf.mxu0
      %v872 = vadd.f32 0.0, %v871
      %v873 = vpop.f32.mrf.mxu0
      %874 = vmatprep.mubr.bf16.mxu0 0
      %875 = vmatmul.mubr.bf16.gmra.mxu0 %v820
      %v876 = vpop.f32.mrf.mxu0
      %v877 = vadd.f32 0.0, %v876
      %v878 = vpop.f32.mrf.mxu0
      %v879 = vpop.f32.mrf.mxu0
      %v880 = vadd.f32 0.0, %v879
      %v881 = vpop.f32.mrf.mxu0
      %882 = vmatprep.mubr.bf16.mxu0 0
      %883 = vmatmul.mubr.bf16.gmra.mxu0 %v823
      %v884 = vpop.f32.mrf.mxu0
      %v885 = vadd.f32 0.0, %v884
      %v886 = vpop.f32.mrf.mxu0
      %v887 = vpop.f32.mrf.mxu0
      %v888 = vpop.f32.mrf.mxu0
      %889 = vdwg.mxu0
      %890 = vrot.lane.b32.xlu0 %v364, 120
      %v891 = vpop.permute.xlu0 %890
      %892 = vrot.lane.b32.xlu0 %v365, 120
      %v893 = vpop.permute.xlu0 %892
      %894 = vrot.lane.b32.xlu0 %v366, 120
      %v895 = vpop.permute.xlu0 %894
      %896 = vrot.lane.b32.xlu0 %v364, 88
      %v897 = vpop.permute.xlu0 %896
      %898 = vrot.lane.b32.xlu0 %v365, 88
      %v899 = vpop.permute.xlu0 %898
      %900 = vrot.lane.b32.xlu0 %v366, 88
      %v901 = vpop.permute.xlu0 %900
      %v903 = vsel %vm376, %v891, 0
      %v906 = vsel %vm376, %v893, 0
      %v909 = vsel %vm376, %v895, 0
      %v912 = vsel %vm376, %v897, 0
      %v915 = vsel %vm376, %v899, 0
      %v918 = vsel %vm376, %v901, 0
      %920 = vmatprep.subr.bf16.mxu0 0
      %921 = vmatpush1.bf16.xpose.msra.mxu0 0
      %922 = vmatprep.subr.bf16.mxu0 0
      %923 = vmatpush1.bf16.xpose.msra.mxu0 0
      %924 = vmatprep.subr.bf16.mxu0 0
      %925 = vmatpush1.bf16.xpose.msra.mxu0 0
      %926 = vmatprep.subr.bf16.mxu0 0
      %927 = vmatpush1.bf16.xpose.msra.mxu0 0
      %928 = vmatprep.subr.bf16.mxu0 0
      %929 = vmatpush1.bf16.xpose.msra.mxu0 0
      %930 = vmatprep.subr.bf16.mxu0 0
      %931 = vmatpush1.bf16.xpose.msra.mxu0 %v918
      %932 = vmatprep.subr.bf16.mxu0 0
      %933 = vmatpush1.bf16.xpose.msra.mxu0 %v915
      %934 = vmatprep.subr.bf16.mxu0 0
      %935 = vmatpush1.bf16.xpose.msra.mxu0 %v912
      %936 = vmatprep.subr.bf16.mxu0 0
      %937 = vmatpush2.bf16.xpose.msra.mxu0 0
      %938 = vmatprep.subr.bf16.mxu0 0
      %939 = vmatpush2.bf16.xpose.msra.mxu0 0
      %940 = vmatprep.subr.bf16.mxu0 0
      %941 = vmatpush2.bf16.xpose.msra.mxu0 0
      %942 = vmatprep.subr.bf16.mxu0 0
      %943 = vmatpush2.bf16.xpose.msra.mxu0 0
      %944 = vmatprep.subr.bf16.mxu0 0
      %945 = vmatpush2.bf16.xpose.msra.mxu0 0
      %946 = vmatprep.subr.bf16.mxu0 0
      %947 = vmatpush2.bf16.xpose.msra.mxu0 0
      %948 = vmatprep.subr.bf16.mxu0 0
      %949 = vmatpush2.bf16.xpose.msra.mxu0 0
      %950 = vmatprep.subr.bf16.mxu0 0
      %951 = vmatpush2.bf16.xpose.msra.mxu0 0
      %952 = vmatprep.mubr.bf16.mxu0 0
      %953 = vmatmul.mubr.bf16.gmra.mxu0 %v903
      %v954 = vpop.f32.mrf.mxu0
      %v955 = vadd.f32 0.0, %v954
      %v956 = vpop.f32.mrf.mxu0
      %v957 = vpop.f32.mrf.mxu0
      %v958 = vadd.f32 0.0, %v957
      %v959 = vpop.f32.mrf.mxu0
      %960 = vmatprep.mubr.bf16.mxu0 0
      %961 = vmatmul.mubr.bf16.gmra.mxu0 %v906
      %v962 = vpop.f32.mrf.mxu0
      %v963 = vadd.f32 0.0, %v962
      %v964 = vpop.f32.mrf.mxu0
      %v965 = vpop.f32.mrf.mxu0
      %v966 = vadd.f32 0.0, %v965
      %v967 = vpop.f32.mrf.mxu0
      %968 = vmatprep.mubr.bf16.mxu0 0
      %969 = vmatmul.mubr.bf16.gmra.mxu0 %v909
      %v970 = vpop.f32.mrf.mxu0
      %v971 = vadd.f32 0.0, %v970
      %v972 = vpop.f32.mrf.mxu0
      %v973 = vpop.f32.mrf.mxu0
      %v974 = vpop.f32.mrf.mxu0
      %975 = vdwg.mxu0
      %v976 = vsel %vm534, %v869, -inf
      %977 = vmax.xlane.f32.xlu0 %v976
      %v978 = vpop.xlane.xlu0 %977
      %v979 = vsel %vm534, %v872, -inf
      %980 = vmax.xlane.f32.xlu0 %v979
      %v981 = vpop.xlane.xlu0 %980
      %v982 = vsel %vm534, %v877, -inf
      %983 = vmax.xlane.f32.xlu0 %v982
      %v984 = vpop.xlane.xlu0 %983
      %v985 = vsel %vm534, %v880, -inf
      %986 = vmax.xlane.f32.xlu0 %v985
      %v987 = vpop.xlane.xlu0 %986
      %v988 = vsel %vm534, %v885, -inf
      %989 = vmax.xlane.f32.xlu0 %v988
      %v990 = vpop.xlane.xlu0 %989
      %v991 = vsel %vm534, %v955, -inf
      %992 = vmax.xlane.f32.xlu0 %v991
      %v993 = vpop.xlane.xlu0 %992
      %v994 = vsel %vm534, %v958, -inf
      %995 = vmax.xlane.f32.xlu0 %v994
      %v996 = vpop.xlane.xlu0 %995
      %v997 = vsel %vm534, %v963, -inf
      %998 = vmax.xlane.f32.xlu0 %v997
      %v999 = vpop.xlane.xlu0 %998
      %v1000 = vsel %vm534, %v966, -inf
      %1001 = vmax.xlane.f32.xlu0 %v1000
      %v1002 = vpop.xlane.xlu0 %1001
      %v1003 = vsel %vm534, %v971, -inf
      %1004 = vmax.xlane.f32.xlu0 %v1003
      %v1005 = vpop.xlane.xlu0 %1004
      %v1006 = vsub.f32 %v869, %v978
      %v1007 = vsub.f32 %v872, %v981
      %v1008 = vsub.f32 %v877, %v984
      %v1009 = vsub.f32 %v880, %v987
      %v1010 = vsub.f32 %v885, %v990
      %v1011 = vsub.f32 %v955, %v993
      %v1012 = vsub.f32 %v958, %v996
      %v1013 = vsub.f32 %v963, %v999
      %v1014 = vsub.f32 %v966, %v1002
      %v1015 = vsub.f32 %v971, %v1005
      %v1016 = vmul.f32 %v1006, 1.442695
      %v1017 = vpow.pop %v1016
      %v1018 = vmul.f32 %v1007, 1.442695
      %v1019 = vpow.pop %v1018
      %v1020 = vmul.f32 %v1008, 1.442695
      %v1021 = vpow.pop %v1020
      %v1022 = vmul.f32 %v1009, 1.442695
      %v1023 = vpow.pop %v1022
      %v1024 = vmul.f32 %v1010, 1.442695
      %v1025 = vpow.pop %v1024
      %v1026 = vmul.f32 %v1011, 1.442695
      %v1027 = vpow.pop %v1026
      %v1028 = vmul.f32 %v1012, 1.442695
      %v1029 = vpow.pop %v1028
      %v1030 = vmul.f32 %v1013, 1.442695
      %v1031 = vpow.pop %v1030
      %v1032 = vmul.f32 %v1014, 1.442695
      %v1033 = vpow.pop %v1032
      %v1034 = vmul.f32 %v1015, 1.442695
      %v1035 = vpow.pop %v1034
      %v1036 = vsel %vm534, %v1017, 0.0
      %1037 = vadd.xlane.f32.xlu0 %v1036
      %v1038 = vpop.xlane.xlu0 %1037
      %v1039 = vsel %vm534, %v1019, 0.0
      %1040 = vadd.xlane.f32.xlu0 %v1039
      %v1041 = vpop.xlane.xlu0 %1040
      %v1042 = vsel %vm534, %v1021, 0.0
      %1043 = vadd.xlane.f32.xlu0 %v1042
      %v1044 = vpop.xlane.xlu0 %1043
      %v1045 = vsel %vm534, %v1023, 0.0
      %1046 = vadd.xlane.f32.xlu0 %v1045
      %v1047 = vpop.xlane.xlu0 %1046
      %v1048 = vsel %vm534, %v1025, 0.0
      %1049 = vadd.xlane.f32.xlu0 %v1048
      %v1050 = vpop.xlane.xlu0 %1049
      %v1051 = vsel %vm534, %v1027, 0.0
      %1052 = vadd.xlane.f32.xlu0 %v1051
      %v1053 = vpop.xlane.xlu0 %1052
      %v1054 = vsel %vm534, %v1029, 0.0
      %1055 = vadd.xlane.f32.xlu0 %v1054
      %v1056 = vpop.xlane.xlu0 %1055
      %v1057 = vsel %vm534, %v1031, 0.0
      %1058 = vadd.xlane.f32.xlu0 %v1057
      %v1059 = vpop.xlane.xlu0 %1058
      %v1060 = vsel %vm534, %v1033, 0.0
      %1061 = vadd.xlane.f32.xlu0 %v1060
      %v1062 = vpop.xlane.xlu0 %1061
      %v1063 = vsel %vm534, %v1035, 0.0
      %1064 = vadd.xlane.f32.xlu0 %v1063
      %v1065 = vpop.xlane.xlu0 %1064
      %v1066 = vrcp.pop %v1038
      %v1067 = vrcp.pop %v1041
      %v1068 = vrcp.pop %v1044
      %v1069 = vrcp.pop %v1047
      %v1070 = vrcp.pop %v1050
      %v1071 = vrcp.pop %v1053
      %v1072 = vrcp.pop %v1056
      %v1073 = vrcp.pop %v1059
      %v1074 = vrcp.pop %v1062
      %v1075 = vrcp.pop %v1065
      %v1076 = vmul.f32 %v1017, %v1066
      %v1077 = vmul.f32 %v1019, %v1067
      %v1078 = vmul.f32 %v1021, %v1068
      %v1079 = vmul.f32 %v1023, %v1069
      %v1080 = vmul.f32 %v1025, %v1070
      %v1081 = vmul.f32 %v1027, %v1071
      %v1082 = vmul.f32 %v1029, %v1072
      %v1083 = vmul.f32 %v1031, %v1073
      %v1084 = vmul.f32 %v1033, %v1074
      %v1085 = vmul.f32 %v1035, %v1075
      %v1086 = vpack.c.bf16 %v1077, %v1076
      %v1087 = vpack.c.bf16 %v1079, %v1078
      %v1088 = vpack.c.bf16 %v1080, %v1080
      %v1089 = vpack.c.bf16 %v1082, %v1081
      %v1090 = vpack.c.bf16 %v1084, %v1083
      %v1091 = vpack.c.bf16 %v1085, %v1085
      %1092 = vrot.lane.b32.xlu0 %v361, 56
      %v1093 = vpop.permute.xlu0 %1092
      %1094 = vrot.lane.b32.xlu0 %v362, 56
      %v1095 = vpop.permute.xlu0 %1094
      %1096 = vrot.lane.b32.xlu0 %v363, 56
      %v1097 = vpop.permute.xlu0 %1096
      %v1101 = vsel %vm534, %v1086, 0
      %v1104 = vsel %vm534, %v1087, 0
      %v1107 = vsel %vm534, %v1088, 0
      %v1110 = vsel %vm668, %v1097, 0
      %1112 = vmatprep.subr.bf16.mxu0 0
      %1113 = vmatpush1.bf16.msra.mxu0 0
      %1114 = vmatprep.subr.bf16.mxu0 0
      %1115 = vmatpush1.bf16.msra.mxu0 0
      %1116 = vmatprep.subr.bf16.mxu0 0
      %1117 = vmatpush1.bf16.msra.mxu0 0
      %1118 = vmatprep.subr.bf16.mxu0 0
      %1119 = vmatpush1.bf16.msra.mxu0 0
      %1120 = vmatprep.subr.bf16.mxu0 0
      %1121 = vmatpush1.bf16.msra.mxu0 0
      %1122 = vmatprep.subr.bf16.mxu0 0
      %1123 = vmatpush1.bf16.msra.mxu0 %v1110
      %1124 = vmatprep.subr.bf16.mxu0 0
      %1125 = vmatpush1.bf16.msra.mxu0 %v1095
      %1126 = vmatprep.subr.bf16.mxu0 0
      %1127 = vmatpush1.bf16.msra.mxu0 %v1093
      %1128 = vmatprep.subr.bf16.mxu0 0
      %1129 = vmatpush2.bf16.msra.mxu0 0
      %1130 = vmatprep.subr.bf16.mxu0 0
      %1131 = vmatpush2.bf16.msra.mxu0 0
      %1132 = vmatprep.subr.bf16.mxu0 0
      %1133 = vmatpush2.bf16.msra.mxu0 0
      %1134 = vmatprep.subr.bf16.mxu0 0
      %1135 = vmatpush2.bf16.msra.mxu0 0
      %1136 = vmatprep.subr.bf16.mxu0 0
      %1137 = vmatpush2.bf16.msra.mxu0 0
      %1138 = vmatprep.subr.bf16.mxu0 0
      %1139 = vmatpush2.bf16.msra.mxu0 0
      %1140 = vmatprep.subr.bf16.mxu0 0
      %1141 = vmatpush2.bf16.msra.mxu0 0
      %1142 = vmatprep.subr.bf16.mxu0 0
      %1143 = vmatpush2.bf16.msra.mxu0 0
      %1144 = vmatprep.mubr.bf16.mxu0 0
      %1145 = vmatmul.mubr.bf16.gmra.mxu0 %v1101
      %v1146 = vpop.f32.mrf.mxu0
      %v1147 = vadd.f32 0.0, %v1146
      %v1148 = vpop.f32.mrf.mxu0
      %v1149 = vpop.f32.mrf.mxu0
      %v1150 = vadd.f32 0.0, %v1149
      %v1151 = vpop.f32.mrf.mxu0
      %1152 = vmatprep.mubr.bf16.mxu0 0
      %1153 = vmatmul.mubr.bf16.gmra.mxu0 %v1104
      %v1154 = vpop.f32.mrf.mxu0
      %v1155 = vadd.f32 0.0, %v1154
      %v1156 = vpop.f32.mrf.mxu0
      %v1157 = vpop.f32.mrf.mxu0
      %v1158 = vadd.f32 0.0, %v1157
      %v1159 = vpop.f32.mrf.mxu0
      %1160 = vmatprep.mubr.bf16.mxu0 0
      %1161 = vmatmul.mubr.bf16.gmra.mxu0 %v1107
      %v1162 = vpop.f32.mrf.mxu0
      %v1163 = vadd.f32 0.0, %v1162
      %v1164 = vpop.f32.mrf.mxu0
      %v1165 = vpop.f32.mrf.mxu0
      %v1166 = vpop.f32.mrf.mxu0
      %1167 = vdwg.mxu0
      %1168 = vrot.lane.b32.xlu0 %v364, 56
      %v1169 = vpop.permute.xlu0 %1168
      %1170 = vrot.lane.b32.xlu0 %v365, 56
      %v1171 = vpop.permute.xlu0 %1170
      %1172 = vrot.lane.b32.xlu0 %v366, 56
      %v1173 = vpop.permute.xlu0 %1172
      %v1177 = vsel %vm534, %v1089, 0
      %v1180 = vsel %vm534, %v1090, 0
      %v1183 = vsel %vm534, %v1091, 0
      %v1186 = vsel %vm668, %v1173, 0
      %1188 = vmatprep.subr.bf16.mxu0 0
      %1189 = vmatpush1.bf16.msra.mxu0 0
      %1190 = vmatprep.subr.bf16.mxu0 0
      %1191 = vmatpush1.bf16.msra.mxu0 0
      %1192 = vmatprep.subr.bf16.mxu0 0
      %1193 = vmatpush1.bf16.msra.mxu0 0
      %1194 = vmatprep.subr.bf16.mxu0 0
      %1195 = vmatpush1.bf16.msra.mxu0 0
      %1196 = vmatprep.subr.bf16.mxu0 0
      %1197 = vmatpush1.bf16.msra.mxu0 0
      %1198 = vmatprep.subr.bf16.mxu0 0
      %1199 = vmatpush1.bf16.msra.mxu0 %v1186
      %1200 = vmatprep.subr.bf16.mxu0 0
      %1201 = vmatpush1.bf16.msra.mxu0 %v1171
      %1202 = vmatprep.subr.bf16.mxu0 0
      %1203 = vmatpush1.bf16.msra.mxu0 %v1169
      %1204 = vmatprep.subr.bf16.mxu0 0
      %1205 = vmatpush2.bf16.msra.mxu0 0
      %1206 = vmatprep.subr.bf16.mxu0 0
      %1207 = vmatpush2.bf16.msra.mxu0 0
      %1208 = vmatprep.subr.bf16.mxu0 0
      %1209 = vmatpush2.bf16.msra.mxu0 0
      %1210 = vmatprep.subr.bf16.mxu0 0
      %1211 = vmatpush2.bf16.msra.mxu0 0
      %1212 = vmatprep.subr.bf16.mxu0 0
      %1213 = vmatpush2.bf16.msra.mxu0 0
      %1214 = vmatprep.subr.bf16.mxu0 0
      %1215 = vmatpush2.bf16.msra.mxu0 0
      %1216 = vmatprep.subr.bf16.mxu0 0
      %1217 = vmatpush2.bf16.msra.mxu0 0
      %1218 = vmatprep.subr.bf16.mxu0 0
      %1219 = vmatpush2.bf16.msra.mxu0 0
      %1220 = vmatprep.mubr.bf16.mxu0 0
      %1221 = vmatmul.mubr.bf16.gmra.mxu0 %v1177
      %v1222 = vpop.f32.mrf.mxu0
      %v1223 = vadd.f32 0.0, %v1222
      %v1224 = vpop.f32.mrf.mxu0
      %v1225 = vpop.f32.mrf.mxu0
      %v1226 = vadd.f32 0.0, %v1225
      %v1227 = vpop.f32.mrf.mxu0
      %1228 = vmatprep.mubr.bf16.mxu0 0
      %1229 = vmatmul.mubr.bf16.gmra.mxu0 %v1180
      %v1230 = vpop.f32.mrf.mxu0
      %v1231 = vadd.f32 0.0, %v1230
      %v1232 = vpop.f32.mrf.mxu0
      %v1233 = vpop.f32.mrf.mxu0
      %v1234 = vadd.f32 0.0, %v1233
      %v1235 = vpop.f32.mrf.mxu0
      %1236 = vmatprep.mubr.bf16.mxu0 0
      %1237 = vmatmul.mubr.bf16.gmra.mxu0 %v1183
      %v1238 = vpop.f32.mrf.mxu0
      %v1239 = vadd.f32 0.0, %v1238
      %v1240 = vpop.f32.mrf.mxu0
      %v1241 = vpop.f32.mrf.mxu0
      %v1242 = vpop.f32.mrf.mxu0
      %1243 = vdwg.mxu0
      %1244 = vrot.lane.b32.xlu0 %v361, 112
      %v1245 = vpop.permute.xlu0 %1244
      %1246 = vrot.lane.b32.xlu0 %v362, 112
      %v1247 = vpop.permute.xlu0 %1246
      %1248 = vrot.lane.b32.xlu0 %v363, 112
      %v1249 = vpop.permute.xlu0 %1248
      %1250 = vrot.lane.b32.xlu0 %v361, 80
      %v1251 = vpop.permute.xlu0 %1250
      %1252 = vrot.lane.b32.xlu0 %v362, 80
      %v1253 = vpop.permute.xlu0 %1252
      %1254 = vrot.lane.b32.xlu0 %v363, 80
      %v1255 = vpop.permute.xlu0 %1254
      %v1257 = vsel %vm376, %v1245, 0
      %v1260 = vsel %vm376, %v1247, 0
      %v1263 = vsel %vm376, %v1249, 0
      %v1266 = vsel %vm376, %v1251, 0
      %v1269 = vsel %vm376, %v1253, 0
      %v1272 = vsel %vm376, %v1255, 0
      %1274 = vmatprep.subr.bf16.mxu0 0
      %1275 = vmatpush1.bf16.xpose.msra.mxu0 0
      %1276 = vmatprep.subr.bf16.mxu0 0
      %1277 = vmatpush1.bf16.xpose.msra.mxu0 0
      %1278 = vmatprep.subr.bf16.mxu0 0
      %1279 = vmatpush1.bf16.xpose.msra.mxu0 0
      %1280 = vmatprep.subr.bf16.mxu0 0
      %1281 = vmatpush1.bf16.xpose.msra.mxu0 0
      %1282 = vmatprep.subr.bf16.mxu0 0
      %1283 = vmatpush1.bf16.xpose.msra.mxu0 0
      %1284 = vmatprep.subr.bf16.mxu0 0
      %1285 = vmatpush1.bf16.xpose.msra.mxu0 %v1272
      %1286 = vmatprep.subr.bf16.mxu0 0
      %1287 = vmatpush1.bf16.xpose.msra.mxu0 %v1269
      %1288 = vmatprep.subr.bf16.mxu0 0
      %1289 = vmatpush1.bf16.xpose.msra.mxu0 %v1266
      %1290 = vmatprep.subr.bf16.mxu0 0
      %1291 = vmatpush2.bf16.xpose.msra.mxu0 0
      %1292 = vmatprep.subr.bf16.mxu0 0
      %1293 = vmatpush2.bf16.xpose.msra.mxu0 0
      %1294 = vmatprep.subr.bf16.mxu0 0
      %1295 = vmatpush2.bf16.xpose.msra.mxu0 0
      %1296 = vmatprep.subr.bf16.mxu0 0
      %1297 = vmatpush2.bf16.xpose.msra.mxu0 0
      %1298 = vmatprep.subr.bf16.mxu0 0
      %1299 = vmatpush2.bf16.xpose.msra.mxu0 0
      %1300 = vmatprep.subr.bf16.mxu0 0
      %1301 = vmatpush2.bf16.xpose.msra.mxu0 0
      %1302 = vmatprep.subr.bf16.mxu0 0
      %1303 = vmatpush2.bf16.xpose.msra.mxu0 0
      %1304 = vmatprep.subr.bf16.mxu0 0
      %1305 = vmatpush2.bf16.xpose.msra.mxu0 0
      %1306 = vmatprep.mubr.bf16.mxu0 0
      %1307 = vmatmul.mubr.bf16.gmra.mxu0 %v1257
      %v1308 = vpop.f32.mrf.mxu0
      %v1309 = vadd.f32 0.0, %v1308
      %v1310 = vpop.f32.mrf.mxu0
      %v1311 = vpop.f32.mrf.mxu0
      %v1312 = vadd.f32 0.0, %v1311
      %v1313 = vpop.f32.mrf.mxu0
      %1314 = vmatprep.mubr.bf16.mxu0 0
      %1315 = vmatmul.mubr.bf16.gmra.mxu0 %v1260
      %v1316 = vpop.f32.mrf.mxu0
      %v1317 = vadd.f32 0.0, %v1316
      %v1318 = vpop.f32.mrf.mxu0
      %v1319 = vpop.f32.mrf.mxu0
      %v1320 = vadd.f32 0.0, %v1319
      %v1321 = vpop.f32.mrf.mxu0
      %1322 = vmatprep.mubr.bf16.mxu0 0
      %1323 = vmatmul.mubr.bf16.gmra.mxu0 %v1263
      %v1324 = vpop.f32.mrf.mxu0
      %v1325 = vadd.f32 0.0, %v1324
      %v1326 = vpop.f32.mrf.mxu0
      %v1327 = vpop.f32.mrf.mxu0
      %v1328 = vpop.f32.mrf.mxu0
      %1329 = vdwg.mxu0
      %1330 = vrot.lane.b32.xlu0 %v364, 112
      %v1331 = vpop.permute.xlu0 %1330
      %1332 = vrot.lane.b32.xlu0 %v365, 112
      %v1333 = vpop.permute.xlu0 %1332
      %1334 = vrot.lane.b32.xlu0 %v366, 112
      %v1335 = vpop.permute.xlu0 %1334
      %1336 = vrot.lane.b32.xlu0 %v364, 80
      %v1337 = vpop.permute.xlu0 %1336
      %1338 = vrot.lane.b32.xlu0 %v365, 80
      %v1339 = vpop.permute.xlu0 %1338
      %1340 = vrot.lane.b32.xlu0 %v366, 80
      %v1341 = vpop.permute.xlu0 %1340
      %v1343 = vsel %vm376, %v1331, 0
      %v1346 = vsel %vm376, %v1333, 0
      %v1349 = vsel %vm376, %v1335, 0
      %v1352 = vsel %vm376, %v1337, 0
      %v1355 = vsel %vm376, %v1339, 0
      %v1358 = vsel %vm376, %v1341, 0
      %1360 = vmatprep.subr.bf16.mxu0 0
      %1361 = vmatpush1.bf16.xpose.msra.mxu0 0
      %1362 = vmatprep.subr.bf16.mxu0 0
      %1363 = vmatpush1.bf16.xpose.msra.mxu0 0
      %1364 = vmatprep.subr.bf16.mxu0 0
      %1365 = vmatpush1.bf16.xpose.msra.mxu0 0
      %1366 = vmatprep.subr.bf16.mxu0 0
      %1367 = vmatpush1.bf16.xpose.msra.mxu0 0
      %1368 = vmatprep.subr.bf16.mxu0 0
      %1369 = vmatpush1.bf16.xpose.msra.mxu0 0
      %1370 = vmatprep.subr.bf16.mxu0 0
      %1371 = vmatpush1.bf16.xpose.msra.mxu0 %v1358
      %1372 = vmatprep.subr.bf16.mxu0 0
      %1373 = vmatpush1.bf16.xpose.msra.mxu0 %v1355
      %1374 = vmatprep.subr.bf16.mxu0 0
      %1375 = vmatpush1.bf16.xpose.msra.mxu0 %v1352
      %1376 = vmatprep.subr.bf16.mxu0 0
      %1377 = vmatpush2.bf16.xpose.msra.mxu0 0
      %1378 = vmatprep.subr.bf16.mxu0 0
      %1379 = vmatpush2.bf16.xpose.msra.mxu0 0
      %1380 = vmatprep.subr.bf16.mxu0 0
      %1381 = vmatpush2.bf16.xpose.msra.mxu0 0
      %1382 = vmatprep.subr.bf16.mxu0 0
      %1383 = vmatpush2.bf16.xpose.msra.mxu0 0
      %1384 = vmatprep.subr.bf16.mxu0 0
      %1385 = vmatpush2.bf16.xpose.msra.mxu0 0
      %1386 = vmatprep.subr.bf16.mxu0 0
      %1387 = vmatpush2.bf16.xpose.msra.mxu0 0
      %1388 = vmatprep.subr.bf16.mxu0 0
      %1389 = vmatpush2.bf16.xpose.msra.mxu0 0
      %1390 = vmatprep.subr.bf16.mxu0 0
      %1391 = vmatpush2.bf16.xpose.msra.mxu0 0
      %1392 = vmatprep.mubr.bf16.mxu0 0
      %1393 = vmatmul.mubr.bf16.gmra.mxu0 %v1343
      %v1394 = vpop.f32.mrf.mxu0
      %v1395 = vadd.f32 0.0, %v1394
      %v1396 = vpop.f32.mrf.mxu0
      %v1397 = vpop.f32.mrf.mxu0
      %v1398 = vadd.f32 0.0, %v1397
      %v1399 = vpop.f32.mrf.mxu0
      %1400 = vmatprep.mubr.bf16.mxu0 0
      %1401 = vmatmul.mubr.bf16.gmra.mxu0 %v1346
      %v1402 = vpop.f32.mrf.mxu0
      %v1403 = vadd.f32 0.0, %v1402
      %v1404 = vpop.f32.mrf.mxu0
      %v1405 = vpop.f32.mrf.mxu0
      %v1406 = vadd.f32 0.0, %v1405
      %v1407 = vpop.f32.mrf.mxu0
      %1408 = vmatprep.mubr.bf16.mxu0 0
      %1409 = vmatmul.mubr.bf16.gmra.mxu0 %v1349
      %v1410 = vpop.f32.mrf.mxu0
      %v1411 = vadd.f32 0.0, %v1410
      %v1412 = vpop.f32.mrf.mxu0
      %v1413 = vpop.f32.mrf.mxu0
      %v1414 = vpop.f32.mrf.mxu0
      %1415 = vdwg.mxu0
      %v1416 = vsel %vm534, %v1309, -inf
      %1417 = vmax.xlane.f32.xlu0 %v1416
      %v1418 = vpop.xlane.xlu0 %1417
      %v1419 = vsel %vm534, %v1312, -inf
      %1420 = vmax.xlane.f32.xlu0 %v1419
      %v1421 = vpop.xlane.xlu0 %1420
      %v1422 = vsel %vm534, %v1317, -inf
      %1423 = vmax.xlane.f32.xlu0 %v1422
      %v1424 = vpop.xlane.xlu0 %1423
      %v1425 = vsel %vm534, %v1320, -inf
      %1426 = vmax.xlane.f32.xlu0 %v1425
      %v1427 = vpop.xlane.xlu0 %1426
      %v1428 = vsel %vm534, %v1325, -inf
      %1429 = vmax.xlane.f32.xlu0 %v1428
      %v1430 = vpop.xlane.xlu0 %1429
      %v1431 = vsel %vm534, %v1395, -inf
      %1432 = vmax.xlane.f32.xlu0 %v1431
      %v1433 = vpop.xlane.xlu0 %1432
      %v1434 = vsel %vm534, %v1398, -inf
      %1435 = vmax.xlane.f32.xlu0 %v1434
      %v1436 = vpop.xlane.xlu0 %1435
      %v1437 = vsel %vm534, %v1403, -inf
      %1438 = vmax.xlane.f32.xlu0 %v1437
      %v1439 = vpop.xlane.xlu0 %1438
      %v1440 = vsel %vm534, %v1406, -inf
      %1441 = vmax.xlane.f32.xlu0 %v1440
      %v1442 = vpop.xlane.xlu0 %1441
      %v1443 = vsel %vm534, %v1411, -inf
      %1444 = vmax.xlane.f32.xlu0 %v1443
      %v1445 = vpop.xlane.xlu0 %1444
      %v1446 = vsub.f32 %v1309, %v1418
      %v1447 = vsub.f32 %v1312, %v1421
      %v1448 = vsub.f32 %v1317, %v1424
      %v1449 = vsub.f32 %v1320, %v1427
      %v1450 = vsub.f32 %v1325, %v1430
      %v1451 = vsub.f32 %v1395, %v1433
      %v1452 = vsub.f32 %v1398, %v1436
      %v1453 = vsub.f32 %v1403, %v1439
      %v1454 = vsub.f32 %v1406, %v1442
      %v1455 = vsub.f32 %v1411, %v1445
      %v1456 = vmul.f32 %v1446, 1.442695
      %v1457 = vpow.pop %v1456
      %v1458 = vmul.f32 %v1447, 1.442695
      %v1459 = vpow.pop %v1458
      %v1460 = vmul.f32 %v1448, 1.442695
      %v1461 = vpow.pop %v1460
      %v1462 = vmul.f32 %v1449, 1.442695
      %v1463 = vpow.pop %v1462
      %v1464 = vmul.f32 %v1450, 1.442695
      %v1465 = vpow.pop %v1464
      %v1466 = vmul.f32 %v1451, 1.442695
      %v1467 = vpow.pop %v1466
      %v1468 = vmul.f32 %v1452, 1.442695
      %v1469 = vpow.pop %v1468
      %v1470 = vmul.f32 %v1453, 1.442695
      %v1471 = vpow.pop %v1470
      %v1472 = vmul.f32 %v1454, 1.442695
      %v1473 = vpow.pop %v1472
      %v1474 = vmul.f32 %v1455, 1.442695
      %v1475 = vpow.pop %v1474
      %v1476 = vsel %vm534, %v1457, 0.0
      %1477 = vadd.xlane.f32.xlu0 %v1476
      %v1478 = vpop.xlane.xlu0 %1477
      %v1479 = vsel %vm534, %v1459, 0.0
      %1480 = vadd.xlane.f32.xlu0 %v1479
      %v1481 = vpop.xlane.xlu0 %1480
      %v1482 = vsel %vm534, %v1461, 0.0
      %1483 = vadd.xlane.f32.xlu0 %v1482
      %v1484 = vpop.xlane.xlu0 %1483
      %v1485 = vsel %vm534, %v1463, 0.0
      %1486 = vadd.xlane.f32.xlu0 %v1485
      %v1487 = vpop.xlane.xlu0 %1486
      %v1488 = vsel %vm534, %v1465, 0.0
      %1489 = vadd.xlane.f32.xlu0 %v1488
      %v1490 = vpop.xlane.xlu0 %1489
      %v1491 = vsel %vm534, %v1467, 0.0
      %1492 = vadd.xlane.f32.xlu0 %v1491
      %v1493 = vpop.xlane.xlu0 %1492
      %v1494 = vsel %vm534, %v1469, 0.0
      %1495 = vadd.xlane.f32.xlu0 %v1494
      %v1496 = vpop.xlane.xlu0 %1495
      %v1497 = vsel %vm534, %v1471, 0.0
      %1498 = vadd.xlane.f32.xlu0 %v1497
      %v1499 = vpop.xlane.xlu0 %1498
      %v1500 = vsel %vm534, %v1473, 0.0
      %1501 = vadd.xlane.f32.xlu0 %v1500
      %v1502 = vpop.xlane.xlu0 %1501
      %v1503 = vsel %vm534, %v1475, 0.0
      %1504 = vadd.xlane.f32.xlu0 %v1503
      %v1505 = vpop.xlane.xlu0 %1504
      %v1506 = vrcp.pop %v1478
      %v1507 = vrcp.pop %v1481
      %v1508 = vrcp.pop %v1484
      %v1509 = vrcp.pop %v1487
      %v1510 = vrcp.pop %v1490
      %v1511 = vrcp.pop %v1493
      %v1512 = vrcp.pop %v1496
      %v1513 = vrcp.pop %v1499
      %v1514 = vrcp.pop %v1502
      %v1515 = vrcp.pop %v1505
      %v1516 = vmul.f32 %v1457, %v1506
      %v1517 = vmul.f32 %v1459, %v1507
      %v1518 = vmul.f32 %v1461, %v1508
      %v1519 = vmul.f32 %v1463, %v1509
      %v1520 = vmul.f32 %v1465, %v1510
      %v1521 = vmul.f32 %v1467, %v1511
      %v1522 = vmul.f32 %v1469, %v1512
      %v1523 = vmul.f32 %v1471, %v1513
      %v1524 = vmul.f32 %v1473, %v1514
      %v1525 = vmul.f32 %v1475, %v1515
      %v1526 = vpack.c.bf16 %v1517, %v1516
      %v1527 = vpack.c.bf16 %v1519, %v1518
      %v1528 = vpack.c.bf16 %v1520, %v1520
      %v1529 = vpack.c.bf16 %v1522, %v1521
      %v1530 = vpack.c.bf16 %v1524, %v1523
      %v1531 = vpack.c.bf16 %v1525, %v1525
      %1532 = vrot.lane.b32.xlu0 %v361, 48
      %v1533 = vpop.permute.xlu0 %1532
      %1534 = vrot.lane.b32.xlu0 %v362, 48
      %v1535 = vpop.permute.xlu0 %1534
      %1536 = vrot.lane.b32.xlu0 %v363, 48
      %v1537 = vpop.permute.xlu0 %1536
      %v1541 = vsel %vm534, %v1526, 0
      %v1544 = vsel %vm534, %v1527, 0
      %v1547 = vsel %vm534, %v1528, 0
      %v1550 = vsel %vm668, %v1537, 0
      %1552 = vmatprep.subr.bf16.mxu0 0
      %1553 = vmatpush1.bf16.msra.mxu0 0
      %1554 = vmatprep.subr.bf16.mxu0 0
      %1555 = vmatpush1.bf16.msra.mxu0 0
      %1556 = vmatprep.subr.bf16.mxu0 0
      %1557 = vmatpush1.bf16.msra.mxu0 0
      %1558 = vmatprep.subr.bf16.mxu0 0
      %1559 = vmatpush1.bf16.msra.mxu0 0
      %1560 = vmatprep.subr.bf16.mxu0 0
      %1561 = vmatpush1.bf16.msra.mxu0 0
      %1562 = vmatprep.subr.bf16.mxu0 0
      %1563 = vmatpush1.bf16.msra.mxu0 %v1550
      %1564 = vmatprep.subr.bf16.mxu0 0
      %1565 = vmatpush1.bf16.msra.mxu0 %v1535
      %1566 = vmatprep.subr.bf16.mxu0 0
      %1567 = vmatpush1.bf16.msra.mxu0 %v1533
      %1568 = vmatprep.subr.bf16.mxu0 0
      %1569 = vmatpush2.bf16.msra.mxu0 0
      %1570 = vmatprep.subr.bf16.mxu0 0
      %1571 = vmatpush2.bf16.msra.mxu0 0
      %1572 = vmatprep.subr.bf16.mxu0 0
      %1573 = vmatpush2.bf16.msra.mxu0 0
      %1574 = vmatprep.subr.bf16.mxu0 0
      %1575 = vmatpush2.bf16.msra.mxu0 0
      %1576 = vmatprep.subr.bf16.mxu0 0
      %1577 = vmatpush2.bf16.msra.mxu0 0
      %1578 = vmatprep.subr.bf16.mxu0 0
      %1579 = vmatpush2.bf16.msra.mxu0 0
      %1580 = vmatprep.subr.bf16.mxu0 0
      %1581 = vmatpush2.bf16.msra.mxu0 0
      %1582 = vmatprep.subr.bf16.mxu0 0
      %1583 = vmatpush2.bf16.msra.mxu0 0
      %1584 = vmatprep.mubr.bf16.mxu0 0
      %1585 = vmatmul.mubr.bf16.gmra.mxu0 %v1541
      %v1586 = vpop.f32.mrf.mxu0
      %v1587 = vadd.f32 0.0, %v1586
      %v1588 = vpop.f32.mrf.mxu0
      %v1589 = vpop.f32.mrf.mxu0
      %v1590 = vadd.f32 0.0, %v1589
      %v1591 = vpop.f32.mrf.mxu0
      %1592 = vmatprep.mubr.bf16.mxu0 0
      %1593 = vmatmul.mubr.bf16.gmra.mxu0 %v1544
      %v1594 = vpop.f32.mrf.mxu0
      %v1595 = vadd.f32 0.0, %v1594
      %v1596 = vpop.f32.mrf.mxu0
      %v1597 = vpop.f32.mrf.mxu0
      %v1598 = vadd.f32 0.0, %v1597
      %v1599 = vpop.f32.mrf.mxu0
      %1600 = vmatprep.mubr.bf16.mxu0 0
      %1601 = vmatmul.mubr.bf16.gmra.mxu0 %v1547
      %v1602 = vpop.f32.mrf.mxu0
      %v1603 = vadd.f32 0.0, %v1602
      %v1604 = vpop.f32.mrf.mxu0
      %v1605 = vpop.f32.mrf.mxu0
      %v1606 = vpop.f32.mrf.mxu0
      %1607 = vdwg.mxu0
      %1608 = vrot.lane.b32.xlu0 %v364, 48
      %v1609 = vpop.permute.xlu0 %1608
      %1610 = vrot.lane.b32.xlu0 %v365, 48
      %v1611 = vpop.permute.xlu0 %1610
      %1612 = vrot.lane.b32.xlu0 %v366, 48
      %v1613 = vpop.permute.xlu0 %1612
      %v1617 = vsel %vm534, %v1529, 0
      %v1620 = vsel %vm534, %v1530, 0
      %v1623 = vsel %vm534, %v1531, 0
      %v1626 = vsel %vm668, %v1613, 0
      %1628 = vmatprep.subr.bf16.mxu0 0
      %1629 = vmatpush1.bf16.msra.mxu0 0
      %1630 = vmatprep.subr.bf16.mxu0 0
      %1631 = vmatpush1.bf16.msra.mxu0 0
      %1632 = vmatprep.subr.bf16.mxu0 0
      %1633 = vmatpush1.bf16.msra.mxu0 0
      %1634 = vmatprep.subr.bf16.mxu0 0
      %1635 = vmatpush1.bf16.msra.mxu0 0
      %1636 = vmatprep.subr.bf16.mxu0 0
      %1637 = vmatpush1.bf16.msra.mxu0 0
      %1638 = vmatprep.subr.bf16.mxu0 0
      %1639 = vmatpush1.bf16.msra.mxu0 %v1626
      %1640 = vmatprep.subr.bf16.mxu0 0
      %1641 = vmatpush1.bf16.msra.mxu0 %v1611
      %1642 = vmatprep.subr.bf16.mxu0 0
      %1643 = vmatpush1.bf16.msra.mxu0 %v1609
      %1644 = vmatprep.subr.bf16.mxu0 0
      %1645 = vmatpush2.bf16.msra.mxu0 0
      %1646 = vmatprep.subr.bf16.mxu0 0
      %1647 = vmatpush2.bf16.msra.mxu0 0
      %1648 = vmatprep.subr.bf16.mxu0 0
      %1649 = vmatpush2.bf16.msra.mxu0 0
      %1650 = vmatprep.subr.bf16.mxu0 0
      %1651 = vmatpush2.bf16.msra.mxu0 0
      %1652 = vmatprep.subr.bf16.mxu0 0
      %1653 = vmatpush2.bf16.msra.mxu0 0
      %1654 = vmatprep.subr.bf16.mxu0 0
      %1655 = vmatpush2.bf16.msra.mxu0 0
      %1656 = vmatprep.subr.bf16.mxu0 0
      %1657 = vmatpush2.bf16.msra.mxu0 0
      %1658 = vmatprep.subr.bf16.mxu0 0
      %1659 = vmatpush2.bf16.msra.mxu0 0
      %1660 = vmatprep.mubr.bf16.mxu0 0
      %1661 = vmatmul.mubr.bf16.gmra.mxu0 %v1617
      %v1662 = vpop.f32.mrf.mxu0
      %v1663 = vadd.f32 0.0, %v1662
      %v1664 = vpop.f32.mrf.mxu0
      %v1665 = vpop.f32.mrf.mxu0
      %v1666 = vadd.f32 0.0, %v1665
      %v1667 = vpop.f32.mrf.mxu0
      %1668 = vmatprep.mubr.bf16.mxu0 0
      %1669 = vmatmul.mubr.bf16.gmra.mxu0 %v1620
      %v1670 = vpop.f32.mrf.mxu0
      %v1671 = vadd.f32 0.0, %v1670
      %v1672 = vpop.f32.mrf.mxu0
      %v1673 = vpop.f32.mrf.mxu0
      %v1674 = vadd.f32 0.0, %v1673
      %v1675 = vpop.f32.mrf.mxu0
      %1676 = vmatprep.mubr.bf16.mxu0 0
      %1677 = vmatmul.mubr.bf16.gmra.mxu0 %v1623
      %v1678 = vpop.f32.mrf.mxu0
      %v1679 = vadd.f32 0.0, %v1678
      %v1680 = vpop.f32.mrf.mxu0
      %v1681 = vpop.f32.mrf.mxu0
      %v1682 = vpop.f32.mrf.mxu0
      %1683 = vdwg.mxu0
      %1684 = vrot.lane.b32.xlu0 %v361, 104
      %v1685 = vpop.permute.xlu0 %1684
      %1686 = vrot.lane.b32.xlu0 %v362, 104
      %v1687 = vpop.permute.xlu0 %1686
      %1688 = vrot.lane.b32.xlu0 %v363, 104
      %v1689 = vpop.permute.xlu0 %1688
      %1690 = vrot.lane.b32.xlu0 %v361, 72
      %v1691 = vpop.permute.xlu0 %1690
      %1692 = vrot.lane.b32.xlu0 %v362, 72
      %v1693 = vpop.permute.xlu0 %1692
      %1694 = vrot.lane.b32.xlu0 %v363, 72
      %v1695 = vpop.permute.xlu0 %1694
      %v1697 = vsel %vm376, %v1685, 0
      %v1700 = vsel %vm376, %v1687, 0
      %v1703 = vsel %vm376, %v1689, 0
      %v1706 = vsel %vm376, %v1691, 0
      %v1709 = vsel %vm376, %v1693, 0
      %v1712 = vsel %vm376, %v1695, 0
      %1714 = vmatprep.subr.bf16.mxu0 0
      %1715 = vmatpush1.bf16.xpose.msra.mxu0 0
      %1716 = vmatprep.subr.bf16.mxu0 0
      %1717 = vmatpush1.bf16.xpose.msra.mxu0 0
      %1718 = vmatprep.subr.bf16.mxu0 0
      %1719 = vmatpush1.bf16.xpose.msra.mxu0 0
      %1720 = vmatprep.subr.bf16.mxu0 0
      %1721 = vmatpush1.bf16.xpose.msra.mxu0 0
      %1722 = vmatprep.subr.bf16.mxu0 0
      %1723 = vmatpush1.bf16.xpose.msra.mxu0 0
      %1724 = vmatprep.subr.bf16.mxu0 0
      %1725 = vmatpush1.bf16.xpose.msra.mxu0 %v1712
      %1726 = vmatprep.subr.bf16.mxu0 0
      %1727 = vmatpush1.bf16.xpose.msra.mxu0 %v1709
      %1728 = vmatprep.subr.bf16.mxu0 0
      %1729 = vmatpush1.bf16.xpose.msra.mxu0 %v1706
      %1730 = vmatprep.subr.bf16.mxu0 0
      %1731 = vmatpush2.bf16.xpose.msra.mxu0 0
      %1732 = vmatprep.subr.bf16.mxu0 0
      %1733 = vmatpush2.bf16.xpose.msra.mxu0 0
      %1734 = vmatprep.subr.bf16.mxu0 0
      %1735 = vmatpush2.bf16.xpose.msra.mxu0 0
      %1736 = vmatprep.subr.bf16.mxu0 0
      %1737 = vmatpush2.bf16.xpose.msra.mxu0 0
      %1738 = vmatprep.subr.bf16.mxu0 0
      %1739 = vmatpush2.bf16.xpose.msra.mxu0 0
      %1740 = vmatprep.subr.bf16.mxu0 0
      %1741 = vmatpush2.bf16.xpose.msra.mxu0 0
      %1742 = vmatprep.subr.bf16.mxu0 0
      %1743 = vmatpush2.bf16.xpose.msra.mxu0 0
      %1744 = vmatprep.subr.bf16.mxu0 0
      %1745 = vmatpush2.bf16.xpose.msra.mxu0 0
      %1746 = vmatprep.mubr.bf16.mxu0 0
      %1747 = vmatmul.mubr.bf16.gmra.mxu0 %v1697
      %v1748 = vpop.f32.mrf.mxu0
      %v1749 = vadd.f32 0.0, %v1748
      %v1750 = vpop.f32.mrf.mxu0
      %v1751 = vpop.f32.mrf.mxu0
      %v1752 = vadd.f32 0.0, %v1751
      %v1753 = vpop.f32.mrf.mxu0
      %1754 = vmatprep.mubr.bf16.mxu0 0
      %1755 = vmatmul.mubr.bf16.gmra.mxu0 %v1700
      %v1756 = vpop.f32.mrf.mxu0
      %v1757 = vadd.f32 0.0, %v1756
      %v1758 = vpop.f32.mrf.mxu0
      %v1759 = vpop.f32.mrf.mxu0
      %v1760 = vadd.f32 0.0, %v1759
      %v1761 = vpop.f32.mrf.mxu0
      %1762 = vmatprep.mubr.bf16.mxu0 0
      %1763 = vmatmul.mubr.bf16.gmra.mxu0 %v1703
      %v1764 = vpop.f32.mrf.mxu0
      %v1765 = vadd.f32 0.0, %v1764
      %v1766 = vpop.f32.mrf.mxu0
      %v1767 = vpop.f32.mrf.mxu0
      %v1768 = vpop.f32.mrf.mxu0
      %1769 = vdwg.mxu0
      %1770 = vrot.lane.b32.xlu0 %v364, 104
      %v1771 = vpop.permute.xlu0 %1770
      %1772 = vrot.lane.b32.xlu0 %v365, 104
      %v1773 = vpop.permute.xlu0 %1772
      %1774 = vrot.lane.b32.xlu0 %v366, 104
      %v1775 = vpop.permute.xlu0 %1774
      %1776 = vrot.lane.b32.xlu0 %v364, 72
      %v1777 = vpop.permute.xlu0 %1776
      %1778 = vrot.lane.b32.xlu0 %v365, 72
      %v1779 = vpop.permute.xlu0 %1778
      %1780 = vrot.lane.b32.xlu0 %v366, 72
      %v1781 = vpop.permute.xlu0 %1780
      %v1783 = vsel %vm376, %v1771, 0
      %v1786 = vsel %vm376, %v1773, 0
      %v1789 = vsel %vm376, %v1775, 0
      %v1792 = vsel %vm376, %v1777, 0
      %v1795 = vsel %vm376, %v1779, 0
      %v1798 = vsel %vm376, %v1781, 0
      %1800 = vmatprep.subr.bf16.mxu0 0
      %1801 = vmatpush1.bf16.xpose.msra.mxu0 0
      %1802 = vmatprep.subr.bf16.mxu0 0
      %1803 = vmatpush1.bf16.xpose.msra.mxu0 0
      %1804 = vmatprep.subr.bf16.mxu0 0
      %1805 = vmatpush1.bf16.xpose.msra.mxu0 0
      %1806 = vmatprep.subr.bf16.mxu0 0
      %1807 = vmatpush1.bf16.xpose.msra.mxu0 0
      %1808 = vmatprep.subr.bf16.mxu0 0
      %1809 = vmatpush1.bf16.xpose.msra.mxu0 0
      %1810 = vmatprep.subr.bf16.mxu0 0
      %1811 = vmatpush1.bf16.xpose.msra.mxu0 %v1798
      %1812 = vmatprep.subr.bf16.mxu0 0
      %1813 = vmatpush1.bf16.xpose.msra.mxu0 %v1795
      %1814 = vmatprep.subr.bf16.mxu0 0
      %1815 = vmatpush1.bf16.xpose.msra.mxu0 %v1792
      %1816 = vmatprep.subr.bf16.mxu0 0
      %1817 = vmatpush2.bf16.xpose.msra.mxu0 0
      %1818 = vmatprep.subr.bf16.mxu0 0
      %1819 = vmatpush2.bf16.xpose.msra.mxu0 0
      %1820 = vmatprep.subr.bf16.mxu0 0
      %1821 = vmatpush2.bf16.xpose.msra.mxu0 0
      %1822 = vmatprep.subr.bf16.mxu0 0
      %1823 = vmatpush2.bf16.xpose.msra.mxu0 0
      %1824 = vmatprep.subr.bf16.mxu0 0
      %1825 = vmatpush2.bf16.xpose.msra.mxu0 0
      %1826 = vmatprep.subr.bf16.mxu0 0
      %1827 = vmatpush2.bf16.xpose.msra.mxu0 0
      %1828 = vmatprep.subr.bf16.mxu0 0
      %1829 = vmatpush2.bf16.xpose.msra.mxu0 0
      %1830 = vmatprep.subr.bf16.mxu0 0
      %1831 = vmatpush2.bf16.xpose.msra.mxu0 0
      %1832 = vmatprep.mubr.bf16.mxu0 0
      %1833 = vmatmul.mubr.bf16.gmra.mxu0 %v1783
      %v1834 = vpop.f32.mrf.mxu0
      %v1835 = vadd.f32 0.0, %v1834
      %v1836 = vpop.f32.mrf.mxu0
      %v1837 = vpop.f32.mrf.mxu0
      %v1838 = vadd.f32 0.0, %v1837
      %v1839 = vpop.f32.mrf.mxu0
      %1840 = vmatprep.mubr.bf16.mxu0 0
      %1841 = vmatmul.mubr.bf16.gmra.mxu0 %v1786
      %v1842 = vpop.f32.mrf.mxu0
      %v1843 = vadd.f32 0.0, %v1842
      %v1844 = vpop.f32.mrf.mxu0
      %v1845 = vpop.f32.mrf.mxu0
      %v1846 = vadd.f32 0.0, %v1845
      %v1847 = vpop.f32.mrf.mxu0
      %1848 = vmatprep.mubr.bf16.mxu0 0
      %1849 = vmatmul.mubr.bf16.gmra.mxu0 %v1789
      %v1850 = vpop.f32.mrf.mxu0
      %v1851 = vadd.f32 0.0, %v1850
      %v1852 = vpop.f32.mrf.mxu0
      %v1853 = vpop.f32.mrf.mxu0
      %v1854 = vpop.f32.mrf.mxu0
      %1855 = vdwg.mxu0
      %v1856 = vsel %vm534, %v1749, -inf
      %1857 = vmax.xlane.f32.xlu0 %v1856
      %v1858 = vpop.xlane.xlu0 %1857
      %v1859 = vsel %vm534, %v1752, -inf
      %1860 = vmax.xlane.f32.xlu0 %v1859
      %v1861 = vpop.xlane.xlu0 %1860
      %v1862 = vsel %vm534, %v1757, -inf
      %1863 = vmax.xlane.f32.xlu0 %v1862
      %v1864 = vpop.xlane.xlu0 %1863
      %v1865 = vsel %vm534, %v1760, -inf
      %1866 = vmax.xlane.f32.xlu0 %v1865
      %v1867 = vpop.xlane.xlu0 %1866
      %v1868 = vsel %vm534, %v1765, -inf
      %1869 = vmax.xlane.f32.xlu0 %v1868
      %v1870 = vpop.xlane.xlu0 %1869
      %v1871 = vsel %vm534, %v1835, -inf
      %1872 = vmax.xlane.f32.xlu0 %v1871
      %v1873 = vpop.xlane.xlu0 %1872
      %v1874 = vsel %vm534, %v1838, -inf
      %1875 = vmax.xlane.f32.xlu0 %v1874
      %v1876 = vpop.xlane.xlu0 %1875
      %v1877 = vsel %vm534, %v1843, -inf
      %1878 = vmax.xlane.f32.xlu0 %v1877
      %v1879 = vpop.xlane.xlu0 %1878
      %v1880 = vsel %vm534, %v1846, -inf
      %1881 = vmax.xlane.f32.xlu0 %v1880
      %v1882 = vpop.xlane.xlu0 %1881
      %v1883 = vsel %vm534, %v1851, -inf
      %1884 = vmax.xlane.f32.xlu0 %v1883
      %v1885 = vpop.xlane.xlu0 %1884
      %v1886 = vsub.f32 %v1749, %v1858
      %v1887 = vsub.f32 %v1752, %v1861
      %v1888 = vsub.f32 %v1757, %v1864
      %v1889 = vsub.f32 %v1760, %v1867
      %v1890 = vsub.f32 %v1765, %v1870
      %v1891 = vsub.f32 %v1835, %v1873
      %v1892 = vsub.f32 %v1838, %v1876
      %v1893 = vsub.f32 %v1843, %v1879
      %v1894 = vsub.f32 %v1846, %v1882
      %v1895 = vsub.f32 %v1851, %v1885
      %v1896 = vmul.f32 %v1886, 1.442695
      %v1897 = vpow.pop %v1896
      %v1898 = vmul.f32 %v1887, 1.442695
      %v1899 = vpow.pop %v1898
      %v1900 = vmul.f32 %v1888, 1.442695
      %v1901 = vpow.pop %v1900
      %v1902 = vmul.f32 %v1889, 1.442695
      %v1903 = vpow.pop %v1902
      %v1904 = vmul.f32 %v1890, 1.442695
      %v1905 = vpow.pop %v1904
      %v1906 = vmul.f32 %v1891, 1.442695
      %v1907 = vpow.pop %v1906
      %v1908 = vmul.f32 %v1892, 1.442695
      %v1909 = vpow.pop %v1908
      %v1910 = vmul.f32 %v1893, 1.442695
      %v1911 = vpow.pop %v1910
      %v1912 = vmul.f32 %v1894, 1.442695
      %v1913 = vpow.pop %v1912
      %v1914 = vmul.f32 %v1895, 1.442695
      %v1915 = vpow.pop %v1914
      %v1916 = vsel %vm534, %v1897, 0.0
      %1917 = vadd.xlane.f32.xlu0 %v1916
      %v1918 = vpop.xlane.xlu0 %1917
      %v1919 = vsel %vm534, %v1899, 0.0
      %1920 = vadd.xlane.f32.xlu0 %v1919
      %v1921 = vpop.xlane.xlu0 %1920
      %v1922 = vsel %vm534, %v1901, 0.0
      %1923 = vadd.xlane.f32.xlu0 %v1922
      %v1924 = vpop.xlane.xlu0 %1923
      %v1925 = vsel %vm534, %v1903, 0.0
      %1926 = vadd.xlane.f32.xlu0 %v1925
      %v1927 = vpop.xlane.xlu0 %1926
      %v1928 = vsel %vm534, %v1905, 0.0
      %1929 = vadd.xlane.f32.xlu0 %v1928
      %v1930 = vpop.xlane.xlu0 %1929
      %v1931 = vsel %vm534, %v1907, 0.0
      %1932 = vadd.xlane.f32.xlu0 %v1931
      %v1933 = vpop.xlane.xlu0 %1932
      %v1934 = vsel %vm534, %v1909, 0.0
      %1935 = vadd.xlane.f32.xlu0 %v1934
      %v1936 = vpop.xlane.xlu0 %1935
      %v1937 = vsel %vm534, %v1911, 0.0
      %1938 = vadd.xlane.f32.xlu0 %v1937
      %v1939 = vpop.xlane.xlu0 %1938
      %v1940 = vsel %vm534, %v1913, 0.0
      %1941 = vadd.xlane.f32.xlu0 %v1940
      %v1942 = vpop.xlane.xlu0 %1941
      %v1943 = vsel %vm534, %v1915, 0.0
      %1944 = vadd.xlane.f32.xlu0 %v1943
      %v1945 = vpop.xlane.xlu0 %1944
      %v1946 = vrcp.pop %v1918
      %v1947 = vrcp.pop %v1921
      %v1948 = vrcp.pop %v1924
      %v1949 = vrcp.pop %v1927
      %v1950 = vrcp.pop %v1930
      %v1951 = vrcp.pop %v1933
      %v1952 = vrcp.pop %v1936
      %v1953 = vrcp.pop %v1939
      %v1954 = vrcp.pop %v1942
      %v1955 = vrcp.pop %v1945
      %v1956 = vmul.f32 %v1897, %v1946
      %v1957 = vmul.f32 %v1899, %v1947
      %v1958 = vmul.f32 %v1901, %v1948
      %v1959 = vmul.f32 %v1903, %v1949
      %v1960 = vmul.f32 %v1905, %v1950
      %v1961 = vmul.f32 %v1907, %v1951
      %v1962 = vmul.f32 %v1909, %v1952
      %v1963 = vmul.f32 %v1911, %v1953
      %v1964 = vmul.f32 %v1913, %v1954
      %v1965 = vmul.f32 %v1915, %v1955
      %v1966 = vpack.c.bf16 %v1957, %v1956
      %v1967 = vpack.c.bf16 %v1959, %v1958
      %v1968 = vpack.c.bf16 %v1960, %v1960
      %v1969 = vpack.c.bf16 %v1962, %v1961
      %v1970 = vpack.c.bf16 %v1964, %v1963
      %v1971 = vpack.c.bf16 %v1965, %v1965
      %1972 = vrot.lane.b32.xlu0 %v361, 40
      %v1973 = vpop.permute.xlu0 %1972
      %1974 = vrot.lane.b32.xlu0 %v362, 40
      %v1975 = vpop.permute.xlu0 %1974
      %1976 = vrot.lane.b32.xlu0 %v363, 40
      %v1977 = vpop.permute.xlu0 %1976
      %v1981 = vsel %vm534, %v1966, 0
      %v1984 = vsel %vm534, %v1967, 0
      %v1987 = vsel %vm534, %v1968, 0
      %v1990 = vsel %vm668, %v1977, 0
      %1992 = vmatprep.subr.bf16.mxu0 0
      %1993 = vmatpush1.bf16.msra.mxu0 0
      %1994 = vmatprep.subr.bf16.mxu0 0
      %1995 = vmatpush1.bf16.msra.mxu0 0
      %1996 = vmatprep.subr.bf16.mxu0 0
      %1997 = vmatpush1.bf16.msra.mxu0 0
      %1998 = vmatprep.subr.bf16.mxu0 0
      %1999 = vmatpush1.bf16.msra.mxu0 0
      %2000 = vmatprep.subr.bf16.mxu0 0
      %2001 = vmatpush1.bf16.msra.mxu0 0
      %2002 = vmatprep.subr.bf16.mxu0 0
      %2003 = vmatpush1.bf16.msra.mxu0 %v1990
      %2004 = vmatprep.subr.bf16.mxu0 0
      %2005 = vmatpush1.bf16.msra.mxu0 %v1975
      %2006 = vmatprep.subr.bf16.mxu0 0
      %2007 = vmatpush1.bf16.msra.mxu0 %v1973
      %2008 = vmatprep.subr.bf16.mxu0 0
      %2009 = vmatpush2.bf16.msra.mxu0 0
      %2010 = vmatprep.subr.bf16.mxu0 0
      %2011 = vmatpush2.bf16.msra.mxu0 0
      %2012 = vmatprep.subr.bf16.mxu0 0
      %2013 = vmatpush2.bf16.msra.mxu0 0
      %2014 = vmatprep.subr.bf16.mxu0 0
      %2015 = vmatpush2.bf16.msra.mxu0 0
      %2016 = vmatprep.subr.bf16.mxu0 0
      %2017 = vmatpush2.bf16.msra.mxu0 0
      %2018 = vmatprep.subr.bf16.mxu0 0
      %2019 = vmatpush2.bf16.msra.mxu0 0
      %2020 = vmatprep.subr.bf16.mxu0 0
      %2021 = vmatpush2.bf16.msra.mxu0 0
      %2022 = vmatprep.subr.bf16.mxu0 0
      %2023 = vmatpush2.bf16.msra.mxu0 0
      %2024 = vmatprep.mubr.bf16.mxu0 0
      %2025 = vmatmul.mubr.bf16.gmra.mxu0 %v1981
      %v2026 = vpop.f32.mrf.mxu0
      %v2027 = vadd.f32 0.0, %v2026
      %v2028 = vpop.f32.mrf.mxu0
      %v2029 = vpop.f32.mrf.mxu0
      %v2030 = vadd.f32 0.0, %v2029
      %v2031 = vpop.f32.mrf.mxu0
      %2032 = vmatprep.mubr.bf16.mxu0 0
      %2033 = vmatmul.mubr.bf16.gmra.mxu0 %v1984
      %v2034 = vpop.f32.mrf.mxu0
      %v2035 = vadd.f32 0.0, %v2034
      %v2036 = vpop.f32.mrf.mxu0
      %v2037 = vpop.f32.mrf.mxu0
      %v2038 = vadd.f32 0.0, %v2037
      %v2039 = vpop.f32.mrf.mxu0
      %2040 = vmatprep.mubr.bf16.mxu0 0
      %2041 = vmatmul.mubr.bf16.gmra.mxu0 %v1987
      %v2042 = vpop.f32.mrf.mxu0
      %v2043 = vadd.f32 0.0, %v2042
      %v2044 = vpop.f32.mrf.mxu0
      %v2045 = vpop.f32.mrf.mxu0
      %v2046 = vpop.f32.mrf.mxu0
      %2047 = vdwg.mxu0
      %2048 = vrot.lane.b32.xlu0 %v364, 40
      %v2049 = vpop.permute.xlu0 %2048
      %2050 = vrot.lane.b32.xlu0 %v365, 40
      %v2051 = vpop.permute.xlu0 %2050
      %2052 = vrot.lane.b32.xlu0 %v366, 40
      %v2053 = vpop.permute.xlu0 %2052
      %v2057 = vsel %vm534, %v1969, 0
      %v2060 = vsel %vm534, %v1970, 0
      %v2063 = vsel %vm534, %v1971, 0
      %v2066 = vsel %vm668, %v2053, 0
      %2068 = vmatprep.subr.bf16.mxu0 0
      %2069 = vmatpush1.bf16.msra.mxu0 0
      %2070 = vmatprep.subr.bf16.mxu0 0
      %2071 = vmatpush1.bf16.msra.mxu0 0
      %2072 = vmatprep.subr.bf16.mxu0 0
      %2073 = vmatpush1.bf16.msra.mxu0 0
      %2074 = vmatprep.subr.bf16.mxu0 0
      %2075 = vmatpush1.bf16.msra.mxu0 0
      %2076 = vmatprep.subr.bf16.mxu0 0
      %2077 = vmatpush1.bf16.msra.mxu0 0
      %2078 = vmatprep.subr.bf16.mxu0 0
      %2079 = vmatpush1.bf16.msra.mxu0 %v2066
      %2080 = vmatprep.subr.bf16.mxu0 0
      %2081 = vmatpush1.bf16.msra.mxu0 %v2051
      %2082 = vmatprep.subr.bf16.mxu0 0
      %2083 = vmatpush1.bf16.msra.mxu0 %v2049
      %2084 = vmatprep.subr.bf16.mxu0 0
      %2085 = vmatpush2.bf16.msra.mxu0 0
      %2086 = vmatprep.subr.bf16.mxu0 0
      %2087 = vmatpush2.bf16.msra.mxu0 0
      %2088 = vmatprep.subr.bf16.mxu0 0
      %2089 = vmatpush2.bf16.msra.mxu0 0
      %2090 = vmatprep.subr.bf16.mxu0 0
      %2091 = vmatpush2.bf16.msra.mxu0 0
      %2092 = vmatprep.subr.bf16.mxu0 0
      %2093 = vmatpush2.bf16.msra.mxu0 0
      %2094 = vmatprep.subr.bf16.mxu0 0
      %2095 = vmatpush2.bf16.msra.mxu0 0
      %2096 = vmatprep.subr.bf16.mxu0 0
      %2097 = vmatpush2.bf16.msra.mxu0 0
      %2098 = vmatprep.subr.bf16.mxu0 0
      %2099 = vmatpush2.bf16.msra.mxu0 0
      %2100 = vmatprep.mubr.bf16.mxu0 0
      %2101 = vmatmul.mubr.bf16.gmra.mxu0 %v2057
      %v2102 = vpop.f32.mrf.mxu0
      %v2103 = vadd.f32 0.0, %v2102
      %v2104 = vpop.f32.mrf.mxu0
      %v2105 = vpop.f32.mrf.mxu0
      %v2106 = vadd.f32 0.0, %v2105
      %v2107 = vpop.f32.mrf.mxu0
      %2108 = vmatprep.mubr.bf16.mxu0 0
      %2109 = vmatmul.mubr.bf16.gmra.mxu0 %v2060
      %v2110 = vpop.f32.mrf.mxu0
      %v2111 = vadd.f32 0.0, %v2110
      %v2112 = vpop.f32.mrf.mxu0
      %v2113 = vpop.f32.mrf.mxu0
      %v2114 = vadd.f32 0.0, %v2113
      %v2115 = vpop.f32.mrf.mxu0
      %2116 = vmatprep.mubr.bf16.mxu0 0
      %2117 = vmatmul.mubr.bf16.gmra.mxu0 %v2063
      %v2118 = vpop.f32.mrf.mxu0
      %v2119 = vadd.f32 0.0, %v2118
      %v2120 = vpop.f32.mrf.mxu0
      %v2121 = vpop.f32.mrf.mxu0
      %v2122 = vpop.f32.mrf.mxu0
      %2123 = vdwg.mxu0
      %2134 = vrot.lane.b32.xlu0 %v1147, 8
      %v2135 = vpop.permute.xlu0 %2134
      %2136 = vrot.lane.b32.xlu0 %v1150, 8
      %v2137 = vpop.permute.xlu0 %2136
      %2138 = vrot.lane.b32.xlu0 %v1155, 8
      %v2139 = vpop.permute.xlu0 %2138
      %2140 = vrot.lane.b32.xlu0 %v1158, 8
      %v2141 = vpop.permute.xlu0 %2140
      %2142 = vrot.lane.b32.xlu0 %v1163, 8
      %v2143 = vpop.permute.xlu0 %2142
      %2144 = vrot.lane.b32.xlu0 %v1223, 8
      %v2145 = vpop.permute.xlu0 %2144
      %2146 = vrot.lane.b32.xlu0 %v1226, 8
      %v2147 = vpop.permute.xlu0 %2146
      %2148 = vrot.lane.b32.xlu0 %v1231, 8
      %v2149 = vpop.permute.xlu0 %2148
      %2150 = vrot.lane.b32.xlu0 %v1234, 8
      %v2151 = vpop.permute.xlu0 %2150
      %2152 = vrot.lane.b32.xlu0 %v1239, 8
      %v2153 = vpop.permute.xlu0 %2152
      %2174 = vrot.lane.b32.xlu0 %v1587, 16
      %v2175 = vpop.permute.xlu0 %2174
      %2176 = vrot.lane.b32.xlu0 %v1590, 16
      %v2177 = vpop.permute.xlu0 %2176
      %2178 = vrot.lane.b32.xlu0 %v1595, 16
      %v2179 = vpop.permute.xlu0 %2178
      %2180 = vrot.lane.b32.xlu0 %v1598, 16
      %v2181 = vpop.permute.xlu0 %2180
      %2182 = vrot.lane.b32.xlu0 %v1603, 16
      %v2183 = vpop.permute.xlu0 %2182
      %2184 = vrot.lane.b32.xlu0 %v1663, 16
      %v2185 = vpop.permute.xlu0 %2184
      %2186 = vrot.lane.b32.xlu0 %v1666, 16
      %v2187 = vpop.permute.xlu0 %2186
      %2188 = vrot.lane.b32.xlu0 %v1671, 16
      %v2189 = vpop.permute.xlu0 %2188
      %2190 = vrot.lane.b32.xlu0 %v1674, 16
      %v2191 = vpop.permute.xlu0 %2190
      %2192 = vrot.lane.b32.xlu0 %v1679, 16
      %v2193 = vpop.permute.xlu0 %2192
      %2214 = vrot.lane.b32.xlu0 %v2027, 24
      %v2215 = vpop.permute.xlu0 %2214
      %2216 = vrot.lane.b32.xlu0 %v2030, 24
      %v2217 = vpop.permute.xlu0 %2216
      %2218 = vrot.lane.b32.xlu0 %v2035, 24
      %v2219 = vpop.permute.xlu0 %2218
      %2220 = vrot.lane.b32.xlu0 %v2038, 24
      %v2221 = vpop.permute.xlu0 %2220
      %2222 = vrot.lane.b32.xlu0 %v2043, 24
      %v2223 = vpop.permute.xlu0 %2222
      %2224 = vrot.lane.b32.xlu0 %v2103, 24
      %v2225 = vpop.permute.xlu0 %2224
      %2226 = vrot.lane.b32.xlu0 %v2106, 24
      %v2227 = vpop.permute.xlu0 %2226
      %2228 = vrot.lane.b32.xlu0 %v2111, 24
      %v2229 = vpop.permute.xlu0 %2228
      %2230 = vrot.lane.b32.xlu0 %v2114, 24
      %v2231 = vpop.permute.xlu0 %2230
      %2232 = vrot.lane.b32.xlu0 %v2119, 24
      %v2233 = vpop.permute.xlu0 %2232
      %v2244 = vsel %vm376, %v707, %v2135
      %v2245 = vsel %vm376, %v710, %v2137
      %v2246 = vsel %vm376, %v715, %v2139
      %v2247 = vsel %vm376, %v718, %v2141
      %v2248 = vsel %vm376, %v723, %v2143
      %v2249 = vsel %vm376, %v783, %v2145
      %v2250 = vsel %vm376, %v786, %v2147
      %v2251 = vsel %vm376, %v791, %v2149
      %v2252 = vsel %vm376, %v794, %v2151
      %v2253 = vsel %vm376, %v799, %v2153
      %vm2254 = vcmask 130048
      %v2255 = vsel %vm2254, %v2244, %v2175
      %v2256 = vsel %vm2254, %v2245, %v2177
      %v2257 = vsel %vm2254, %v2246, %v2179
      %v2258 = vsel %vm2254, %v2247, %v2181
      %v2259 = vsel %vm2254, %v2248, %v2183
      %v2260 = vsel %vm2254, %v2249, %v2185
      %v2261 = vsel %vm2254, %v2250, %v2187
      %v2262 = vsel %vm2254, %v2251, %v2189
      %v2263 = vsel %vm2254, %v2252, %v2191
      %v2264 = vsel %vm2254, %v2253, %v2193
      %vm2265 = vcmask 195584
      %v2266 = vsel %vm2265, %v2255, %v2215
      %v2267 = vsel %vm2265, %v2256, %v2217
      %v2268 = vsel %vm2265, %v2257, %v2219
      %v2269 = vsel %vm2265, %v2258, %v2221
      %v2270 = vsel %vm2265, %v2259, %v2223
      %v2271 = vsel %vm2265, %v2260, %v2225
      %v2272 = vsel %vm2265, %v2261, %v2227
      %v2273 = vsel %vm2265, %v2262, %v2229
      %v2274 = vsel %vm2265, %v2263, %v2231
      %v2275 = vsel %vm2265, %v2264, %v2233
      %v2276 = vpack.c.bf16 %v2267, %v2266
      %v2277 = vpack.c.bf16 %v2269, %v2268
      %v2278 = vpack.c.bf16 %v2271, %v2270
      %v2279 = vpack.c.bf16 %v2273, %v2272
      %v2280 = vpack.c.bf16 %v2275, %v2274
      %v2281 = vld [vmem:[%s3] sm:$0xf]
      %v2282 = vld [vmem:[%s3 + $0x4] sm:$0xf]
      %v2283 = vld [vmem:[%s3 + $0x8] sm:$0xf]
      %v2284 = vld [vmem:[%s3 + $0xc] sm:$0xf]
      %v2285 = vld [vmem:[%s4] sm:$0x1]
      %v2287 = vlaneseq
      %v2288 = vshrl.u32 %v2287, 7
      %v2289 = vsub.s32 0, %v2288
      %v2290 = vrot.slane %v2285, %v2289
      %v2296 = vunpack.c.l.b16 %v2281
      %v2297 = vunpack.c.l.b16 %v2282
      %v2298 = vunpack.c.l.b16 %v2283
      %v2299 = vunpack.c.l.b16 %v2284
      %v2300 = vpack.c.b16 %v2297, %v2296
      %v2301 = vpack.c.b16 %v2299, %v2298
      %v2305 = vsel %vm272, %v2276, 0
      %v2308 = vsel %vm272, %v2277, 0
      %v2311 = vsel %vm272, %v2278, 0
      %v2314 = vsel %vm272, %v2279, 0
      %v2317 = vsel %vm272, %v2280, 0
      %2319 = vmatprep.subr.bf16.mxu0 0
      %2320 = vmatpush1.bf16.msra.mxu0 0
      %2321 = vmatprep.subr.bf16.mxu0 0
      %2322 = vmatpush1.bf16.msra.mxu0 0
      %2323 = vmatprep.subr.bf16.mxu0 0
      %2324 = vmatpush1.bf16.msra.mxu0 0
      %2325 = vmatprep.subr.bf16.mxu0 0
      %2326 = vmatpush1.bf16.msra.mxu0 0
      %2327 = vmatprep.subr.bf16.mxu0 0
      %2328 = vmatpush1.bf16.msra.mxu0 0
      %2329 = vmatprep.subr.bf16.mxu0 0
      %2330 = vmatpush1.bf16.msra.mxu0 0
      %2331 = vmatprep.subr.bf16.mxu0 0
      %2332 = vmatpush1.bf16.msra.mxu0 %v2301
      %2333 = vmatprep.subr.bf16.mxu0 0
      %2334 = vmatpush1.bf16.msra.mxu0 %v2300
      %2335 = vmatprep.subr.bf16.mxu0 0
      %2336 = vmatpush2.bf16.msra.mxu0 0
      %2337 = vmatprep.subr.bf16.mxu0 0
      %2338 = vmatpush2.bf16.msra.mxu0 0
      %2339 = vmatprep.subr.bf16.mxu0 0
      %2340 = vmatpush2.bf16.msra.mxu0 0
      %2341 = vmatprep.subr.bf16.mxu0 0
      %2342 = vmatpush2.bf16.msra.mxu0 0
      %2343 = vmatprep.subr.bf16.mxu0 0
      %2344 = vmatpush2.bf16.msra.mxu0 0
      %2345 = vmatprep.subr.bf16.mxu0 0
      %2346 = vmatpush2.bf16.msra.mxu0 0
      %2347 = vmatprep.subr.bf16.mxu0 0
      %2348 = vmatpush2.bf16.msra.mxu0 0
      %2349 = vmatprep.subr.bf16.mxu0 0
      %2350 = vmatpush2.bf16.msra.mxu0 0
      %2351 = vmatprep.mubr.bf16.mxu0 0
      %2352 = vmatmul.mubr.bf16.gmra.mxu0 %v2305
      %v2353 = vpop.f32.mrf.mxu0
      %v2354 = vadd.f32 %v2290, %v2353
      %v2355 = vpop.f32.mrf.mxu0
      %v2356 = vpop.f32.mrf.mxu0
      %v2357 = vadd.f32 %v2290, %v2356
      %v2358 = vpop.f32.mrf.mxu0
      %2359 = vmatprep.mubr.bf16.mxu0 0
      %2360 = vmatmul.mubr.bf16.gmra.mxu0 %v2308
      %v2361 = vpop.f32.mrf.mxu0
      %v2362 = vadd.f32 %v2290, %v2361
      %v2363 = vpop.f32.mrf.mxu0
      %v2364 = vpop.f32.mrf.mxu0
      %v2365 = vadd.f32 %v2290, %v2364
      %v2366 = vpop.f32.mrf.mxu0
      %2367 = vmatprep.mubr.bf16.mxu0 0
      %2368 = vmatmul.mubr.bf16.gmra.mxu0 %v2311
      %v2369 = vpop.f32.mrf.mxu0
      %v2370 = vadd.f32 %v2290, %v2369
      %v2371 = vpop.f32.mrf.mxu0
      %v2372 = vpop.f32.mrf.mxu0
      %v2373 = vadd.f32 %v2290, %v2372
      %v2374 = vpop.f32.mrf.mxu0
      %2375 = vmatprep.mubr.bf16.mxu0 0
      %2376 = vmatmul.mubr.bf16.gmra.mxu0 %v2314
      %v2377 = vpop.f32.mrf.mxu0
      %v2378 = vadd.f32 %v2290, %v2377
      %v2379 = vpop.f32.mrf.mxu0
      %v2380 = vpop.f32.mrf.mxu0
      %v2381 = vadd.f32 %v2290, %v2380
      %v2382 = vpop.f32.mrf.mxu0
      %2383 = vmatprep.mubr.bf16.mxu0 0
      %2384 = vmatmul.mubr.bf16.gmra.mxu0 %v2317
      %v2385 = vpop.f32.mrf.mxu0
      %v2386 = vadd.f32 %v2290, %v2385
      %v2387 = vpop.f32.mrf.mxu0
      %v2388 = vpop.f32.mrf.mxu0
      %v2389 = vadd.f32 %v2290, %v2388
      %v2390 = vpop.f32.mrf.mxu0
      %2391 = vdwg.mxu0
      %2392 = vst.msk [vmem:[%s231] sm:$0xff] %vm272, %v2354
      %2393 = vst.msk [vmem:[%s231 + $0x8] sm:$0xff] %vm272, %v2357
      %2394 = vst.msk [vmem:[%s231 + $0x10] sm:$0xff] %vm272, %v2362
      %2395 = vst.msk [vmem:[%s231 + $0x18] sm:$0xff] %vm272, %v2365
      %2396 = vst.msk [vmem:[%s231 + $0x20] sm:$0xff] %vm272, %v2370
      %2397 = vst.msk [vmem:[%s231 + $0x28] sm:$0xff] %vm272, %v2373
      %2398 = vst.msk [vmem:[%s231 + $0x30] sm:$0xff] %vm272, %v2378
      %2399 = vst.msk [vmem:[%s231 + $0x38] sm:$0xff] %vm272, %v2381
      %2400 = vst.msk [vmem:[%s231 + $0x40] sm:$0xff] %vm272, %v2386
      %2401 = vst.msk [vmem:[%s231 + $0x48] sm:$0xff] %vm272, %v2389
      %s2402 = smul.u32 2, %s16
      %p2403 = scmp.lt.s32.totalorder %s2402, 3
      %s2404 = scalar_select %p2403, %s2402, 3
      %s2405 = smul.addr %s2404, 5
      %s2406 = smul.addr %s2405, 8
      %s2407 = scalar_lea.vmem %s5, %s2406
      // Predicated region
      $region41: #{tpu_custom_call.1} parent=39 // pred_check
        %p2408 = pneg %p144
      $region42: #{tpu_custom_call.1} parent=39 // pred_check_branch
        %2410 = sbr.rel (%p2408) target = $region44
      $region43: #{tpu_custom_call.1} parent=39 // pred_region
        %s2411 = smul.u32 2, %s16
      $region44: #{tpu_custom_call.1} parent=39 // pred_fallthru
        _
    $region40: #{tpu_custom_call.1} parent=5 // pred_fallthru
      _
    %p2412 = scmp.le.s32.totalorder 2, %s11
    // Predicated region
    $region45: #{tpu_custom_call.1} parent=5 // pred_check
      %p2413 = pneg %p2412
    $region46: #{tpu_custom_call.1} parent=5 // pred_check_branch
      %2415 = sbr.rel (%p2413) target = $region48
    $region47: #{tpu_custom_call.1} parent=5 // pred_region
      %s2416 = ssub.s32 %s11, 2
      // Predicated region
      $region49: #{tpu_custom_call.1} parent=47 // pred_check
        %p2417 = pneg %p150
      $region50: #{tpu_custom_call.1} parent=47 // pred_check_branch
        %2419 = sbr.rel (%p2417) target = $region52
      $region51: #{tpu_custom_call.1} parent=47 // pred_region
        %s2420 = smul.u32 2, %s17
        %p2421 = scmp.lt.s32.totalorder %s2420, 3
        %s2422 = scalar_select %p2421, %s2420, 3
        %s2423 = smul.addr %s2422, 5
        %s2424 = smul.addr %s2423, 8
        %s2425 = scalar_lea.vmem %s5, %s2424
      $region52: #{tpu_custom_call.1} parent=47 // pred_fallthru
        _
    $region48: #{tpu_custom_call.1} parent=5 // pred_fallthru
      _
  $region6: #{tpu_custom_call.1} parent=0 // loop_footer
    %s15 = sadd.s32 1, %s11
  $region7: #{tpu_custom_call.1} parent=0 // loop_footer_branch
    %10 = sbr.rel target = $region3
  $region8: #{tpu_custom_call.1} parent=0 // loop_exit
    _

</llo_original>
